<compile_context>
chip_gen: v5e
topology: v5e:2x2
jax: 0.10.0
libtpu: 0.0.40
codegen_flags: <defaults>
</compile_context>

<pallas_src>
import jax
import jax.numpy as jnp
from jax.experimental import pallas as pl
from jax.experimental.pallas import tpu as pltpu

BN_EPS = 1e-5
NORM_EPS = 1e-12
LANE = 128
SUBLANE = 8


def _round_up(v, m):
    return (v + m - 1) // m * m


def projection_head_forward(x, params, *, batch_tile=256):
    """x: [B, in_dim] float32.  params: dict of weights (see init_params)."""
    B, in_dim = x.shape
    hidden = params["w1"].shape[1]
    out_dim = params["w3"].shape[1]

    # ---- lane/sublane padding: 128-lane feature dims, batch -> tile multiple ----
    in_p = _round_up(in_dim, LANE)
    hid_p = _round_up(hidden, LANE)
    out_p = _round_up(out_dim, LANE)
    tb = min(batch_tile, _round_up(B, SUBLANE))
    b_p = _round_up(B, tb)
    n_tiles = b_p // tb

    def pad2(a, rows, cols, dtype):
        a = a.astype(dtype)
        return jnp.pad(a, ((0, rows - a.shape[0]), (0, cols - a.shape[1])))

    # bf16 MXU operands; f32 bias / BN affine params (elementwise math stays f32).
    xp = pad2(x, b_p, in_p, jnp.bfloat16)
    w1 = pad2(params["w1"], in_p, hid_p, jnp.bfloat16)
    w2 = pad2(params["w2"], hid_p, hid_p, jnp.bfloat16)
    w3 = pad2(params["w3"], hid_p, out_p, jnp.bfloat16)
    b1 = pad2(params["b1"], 1, hid_p, jnp.float32)
    g1 = pad2(params["g1"], 1, hid_p, jnp.float32)
    be1 = pad2(params["be1"], 1, hid_p, jnp.float32)
    b2 = pad2(params["b2"], 1, hid_p, jnp.float32)
    g2 = pad2(params["g2"], 1, hid_p, jnp.float32)
    be2 = pad2(params["be2"], 1, hid_p, jnp.float32)
    b3 = pad2(params["b3"], 1, out_p, jnp.float32)

    inv_b = 1.0 / float(B)  # BN statistics are over the TRUE batch only

    def kernel(x_ref, w1_ref, b1_ref, g1_ref, be1_ref,
               w2_ref, b2_ref, g2_ref, be2_ref, w3_ref, b3_ref,
               o_ref, sum1, ssq1, sum2, ssq2):
        p = pl.program_id(0)   # pass: 0 = layer1 stats, 1 = layer2 stats, 2 = emit
        t = pl.program_id(1)   # batch tile

        @pl.when((p == 0) & (t == 0))
        def _init():
            sum1[...] = jnp.zeros_like(sum1)
            ssq1[...] = jnp.zeros_like(ssq1)
            sum2[...] = jnp.zeros_like(sum2)
            ssq2[...] = jnp.zeros_like(ssq2)

        def valid_mask():
            # 1.0 for real batch rows, 0.0 for padded rows (keeps BN stats exact).
            rows = jax.lax.broadcasted_iota(jnp.int32, (tb, 1), 0) + t * tb
            return (rows < B).astype(jnp.float32)

        def linear1():
            return jnp.dot(x_ref[...], w1_ref[...],
                           preferred_element_type=jnp.float32) + b1_ref[...]

        def linear2(a1):
            return jnp.dot(a1.astype(jnp.bfloat16), w2_ref[...],
                           preferred_element_type=jnp.float32) + b2_ref[...]

        def bn_relu(h, s_ref, ss_ref, g_ref, beta_ref):
            mean = s_ref[...] * inv_b
            var = jnp.maximum(ss_ref[...] * inv_b - mean * mean, 0.0)  # biased var
            hhat = (h - mean) * jax.lax.rsqrt(var + BN_EPS)
            return jnp.maximum(hhat * g_ref[...] + beta_ref[...], 0.0)

        @pl.when(p == 0)
        def _pass0():  # accumulate layer1 pre-BN stats over the full batch
            h = linear1()
            hm = h * valid_mask()
            sum1[...] += jnp.sum(hm, axis=0, keepdims=True)
            ssq1[...] += jnp.sum(h * hm, axis=0, keepdims=True)
            o_ref[...] = jnp.zeros_like(o_ref)

        @pl.when(p == 1)
        def _pass1():  # accumulate layer2 pre-BN stats (layer1 stats complete)
            a1 = bn_relu(linear1(), sum1, ssq1, g1_ref, be1_ref)
            h2 = linear2(a1)
            hm = h2 * valid_mask()
            sum2[...] += jnp.sum(hm, axis=0, keepdims=True)
            ssq2[...] += jnp.sum(h2 * hm, axis=0, keepdims=True)
            o_ref[...] = jnp.zeros_like(o_ref)

        @pl.when(p == 2)
        def _pass2():  # full forward with both stat sets, emit normalized rows
            a1 = bn_relu(linear1(), sum1, ssq1, g1_ref, be1_ref)
            a2 = bn_relu(linear2(a1), sum2, ssq2, g2_ref, be2_ref)
            out = jnp.dot(a2.astype(jnp.bfloat16), w3_ref[...],
                          preferred_element_type=jnp.float32) + b3_ref[...]
            ssq = jnp.sum(out * out, axis=1, keepdims=True)
            # out / max(||out||, eps) == out * rsqrt(max(||out||^2, eps^2))
            out = out * jax.lax.rsqrt(jnp.maximum(ssq, NORM_EPS * NORM_EPS))
            o_ref[...] = out.astype(o_ref.dtype)

    def weight_spec(shape):
        return pl.BlockSpec(shape, lambda p, t: (0, 0))  # fetched once, stays resident

    grid_spec = pltpu.PrefetchScalarGridSpec(
        num_scalar_prefetch=0,
        grid=(3, n_tiles),
        in_specs=[
            pl.BlockSpec((tb, in_p), lambda p, t: (t, 0)),   # x batch tile
            weight_spec((in_p, hid_p)),                      # w1
            weight_spec((1, hid_p)),                         # b1
            weight_spec((1, hid_p)),                         # g1
            weight_spec((1, hid_p)),                         # be1
            weight_spec((hid_p, hid_p)),                     # w2
            weight_spec((1, hid_p)),                         # b2
            weight_spec((1, hid_p)),                         # g2
            weight_spec((1, hid_p)),                         # be2
            weight_spec((hid_p, out_p)),                     # w3
            weight_spec((1, out_p)),                         # b3
        ],
        out_specs=pl.BlockSpec((tb, out_p), lambda p, t: (t, 0)),
        scratch_shapes=[pltpu.VMEM((1, hid_p), jnp.float32)] * 4,
    )

    # Rough VMEM footprint (double-buffered tiles + resident weights + scratch).
    dbl = 2
    vmem_bytes = (
        dbl * tb * in_p * 2
        + dbl * tb * out_p * 4
        + dbl * 2 * (in_p * hid_p + hid_p * hid_p + hid_p * out_p)
        + dbl * 4 * (6 * hid_p + out_p)
        + 4 * 4 * hid_p
    )
    vmem_limit = int(min(64 * 1024 * 1024, max(4 * 1024 * 1024, 2 * vmem_bytes)))

    out_padded = pl.pallas_call(
        kernel,
        out_shape=jax.ShapeDtypeStruct((b_p, out_p), jnp.float32),
        grid_spec=grid_spec,
        compiler_params=pltpu.CompilerParams(
            # Batch-tile axis carries cross-tile BN statistics in scratch, so it
            # must stay sequential; the pass axis is sequential by construction.
            dimension_semantics=("arbitrary", "arbitrary"),
            vmem_limit_bytes=vmem_limit,
        ),
    )(xp, w1, b1, g1, be1, w2, b2, g2, be2, w3, b3)

    return out_padded[:B, :out_dim]


def init_params(key, in_dim, hidden_dim, out_dim):
    """Deterministic synthetic parameters matching the PyTorch module shapes.

    Linear weights are stored already transposed to [fan_in, fan_out] so the
    kernel computes x @ W + b.  Biases / BN params are kept 2-D [1, F].
    """
    ks = jax.random.split(key, 6)

    def lin(k, fi, fo):
        bound = 1.0 / jnp.sqrt(fi)
        kw, kb = jax.random.split(k)
        w = jax.random.uniform(kw, (fi, fo), jnp.float32, -bound, bound)
        b = jax.random.uniform(kb, (1, fo), jnp.float32, -bound, bound)
        return w, b

    w1, b1 = lin(ks[0], in_dim, hidden_dim)
    w2, b2 = lin(ks[1], hidden_dim, hidden_dim)
    w3, b3 = lin(ks[2], hidden_dim, out_dim)

    g1 = 1.0 + 0.1 * jax.random.normal(ks[3], (1, hidden_dim), jnp.float32)
    be1 = 0.1 * jax.random.normal(ks[4], (1, hidden_dim), jnp.float32)
    g2 = 1.0 + 0.1 * jax.random.normal(ks[5], (1, hidden_dim), jnp.float32)
    be2 = jnp.zeros((1, hidden_dim), jnp.float32)

    return dict(w1=w1, b1=b1, g1=g1, be1=be1,
                w2=w2, b2=b2, g2=g2, be2=be2,
                w3=w3, b3=b3)


def reference_forward(x, p):
    """Pure-f32 JAX reference (PyTorch training-mode semantics)."""
    h = x @ p["w1"] + p["b1"]
    m = h.mean(0, keepdims=True)
    v = ((h - m) ** 2).mean(0, keepdims=True)
    h = jnp.maximum((h - m) / jnp.sqrt(v + BN_EPS) * p["g1"] + p["be1"], 0.0)
    h = h @ p["w2"] + p["b2"]
    m = h.mean(0, keepdims=True)
    v = ((h - m) ** 2).mean(0, keepdims=True)
    h = jnp.maximum((h - m) / jnp.sqrt(v + BN_EPS) * p["g2"] + p["be2"], 0.0)
    o = h @ p["w3"] + p["b3"]
    n = jnp.sqrt(jnp.sum(o * o, axis=1, keepdims=True))
    return o / jnp.maximum(n, NORM_EPS)


if __name__ == "__main__":
    key = jax.random.PRNGKey(0)
    k_x, k_x2, k_p = jax.random.split(key, 3)

    B, IN_DIM, HIDDEN_DIM, OUT_DIM = 8, 32, 64, 16
    x = jax.random.normal(k_x, (B, IN_DIM), jnp.float32)
    params = init_params(k_p, IN_DIM, HIDDEN_DIM, OUT_DIM)

    out = jax.block_until_ready(projection_head_forward(x, params))
    ref = reference_forward(x, params)
    assert out.shape == (B, OUT_DIM)
    # bf16 MXU operands with f32 accumulation -> slightly looser tolerance.
    assert bool(jnp.allclose(out, ref, atol=3e-2, rtol=3e-2))
    assert bool(jnp.allclose(jnp.linalg.norm(out, axis=1), 1.0, atol=1e-3))

    # Second check: multi-tile batch with padding/masking exercised
    # (B=20, batch_tile=8 -> 3 batch tiles, 4 padded rows masked out of BN stats).
    B2 = 20
    x2 = jax.random.normal(k_x2, (B2, IN_DIM), jnp.float32)
    out2 = jax.block_until_ready(
        projection_head_forward(x2, params, batch_tile=8))
    ref2 = reference_forward(x2, params)
    assert out2.shape == (B2, OUT_DIM)
    assert bool(jnp.allclose(out2, ref2, atol=3e-2, rtol=3e-2))
    assert bool(jnp.allclose(jnp.linalg.norm(out2, axis=1), 1.0, atol=1e-3))

    print("KERNEL_OK")
</pallas_src>

<mosaic_0001>
module attributes {stable_mosaic.version = 11 : i64} {
  func.func @kernel(%arg0: i32, %arg1: i32, %arg2: memref<8x128xbf16, #tpu.memory_space<vmem>>, %arg3: memref<128x128xbf16, #tpu.memory_space<vmem>>, %arg4: memref<1x128xf32, #tpu.memory_space<vmem>>, %arg5: memref<1x128xf32, #tpu.memory_space<vmem>>, %arg6: memref<1x128xf32, #tpu.memory_space<vmem>>, %arg7: memref<128x128xbf16, #tpu.memory_space<vmem>>, %arg8: memref<1x128xf32, #tpu.memory_space<vmem>>, %arg9: memref<1x128xf32, #tpu.memory_space<vmem>>, %arg10: memref<1x128xf32, #tpu.memory_space<vmem>>, %arg11: memref<128x128xbf16, #tpu.memory_space<vmem>>, %arg12: memref<1x128xf32, #tpu.memory_space<vmem>>, %arg13: memref<8x128xf32, #tpu.memory_space<vmem>>, %arg14: memref<1x128xf32, #tpu.memory_space<vmem>>, %arg15: memref<1x128xf32, #tpu.memory_space<vmem>>, %arg16: memref<1x128xf32, #tpu.memory_space<vmem>>, %arg17: memref<1x128xf32, #tpu.memory_space<vmem>>) attributes {dimension_semantics = [#tpu.dimension_semantics<arbitrary>, #tpu.dimension_semantics<arbitrary>], iteration_bounds = array<i64: 3, 1>, scalar_prefetch = 0 : i64, scratch_operands = 4 : i64, tpu.core_type = #tpu.core_type<tc>, window_params = [{transform_indices = @transform_0, window_bounds = array<i64: 8, 128>}, {pipeline_mode = #tpu.pipeline_mode<synchronous>, transform_indices = @transform_1, window_bounds = array<i64: 128, 128>}, {pipeline_mode = #tpu.pipeline_mode<synchronous>, transform_indices = @transform_2, window_bounds = array<i64: 1, 128>}, {pipeline_mode = #tpu.pipeline_mode<synchronous>, transform_indices = @transform_3, window_bounds = array<i64: 1, 128>}, {pipeline_mode = #tpu.pipeline_mode<synchronous>, transform_indices = @transform_4, window_bounds = array<i64: 1, 128>}, {pipeline_mode = #tpu.pipeline_mode<synchronous>, transform_indices = @transform_5, window_bounds = array<i64: 128, 128>}, {pipeline_mode = #tpu.pipeline_mode<synchronous>, transform_indices = @transform_6, window_bounds = array<i64: 1, 128>}, {pipeline_mode = #tpu.pipeline_mode<synchronous>, transform_indices = @transform_7, window_bounds = array<i64: 1, 128>}, {pipeline_mode = #tpu.pipeline_mode<synchronous>, transform_indices = @transform_8, window_bounds = array<i64: 1, 128>}, {pipeline_mode = #tpu.pipeline_mode<synchronous>, transform_indices = @transform_9, window_bounds = array<i64: 128, 128>}, {pipeline_mode = #tpu.pipeline_mode<synchronous>, transform_indices = @transform_10, window_bounds = array<i64: 1, 128>}, {transform_indices = @transform_11, window_bounds = array<i64: 8, 128>}]} {
    %c0_i32 = arith.constant 0 : i32
    %0 = arith.cmpi eq, %arg0, %c0_i32 : i32
    %c0_i32_0 = arith.constant 0 : i32
    %1 = arith.cmpi eq, %arg1, %c0_i32_0 : i32
    %2 = arith.andi %0, %1 : i1
    %3 = arith.extui %2 : i1 to i32
    %c0_i32_1 = arith.constant 0 : i32
    %4 = arith.cmpi ne, %3, %c0_i32_1 : i32
    scf.if %4 {
      %cst = arith.constant 0.000000e+00 : f32
      %14 = vector.broadcast %cst : f32 to vector<1x128xf32>
      %c0 = arith.constant 0 : index
      %c0_6 = arith.constant 0 : index
      %15 = vector.load %arg14[%c0, %c0_6] : memref<1x128xf32, #tpu.memory_space<vmem>>, vector<1x128xf32>
      tpu.vector_store %arg14[%c0, %c0_6], %14 {strides = array<i32>} : memref<1x128xf32, #tpu.memory_space<vmem>>, vector<1x128xf32>,
      %cst_7 = arith.constant 0.000000e+00 : f32
      %16 = vector.broadcast %cst_7 : f32 to vector<1x128xf32>
      %c0_8 = arith.constant 0 : index
      %c0_9 = arith.constant 0 : index
      %17 = vector.load %arg15[%c0_8, %c0_9] : memref<1x128xf32, #tpu.memory_space<vmem>>, vector<1x128xf32>
      tpu.vector_store %arg15[%c0_8, %c0_9], %16 {strides = array<i32>} : memref<1x128xf32, #tpu.memory_space<vmem>>, vector<1x128xf32>,
      %cst_10 = arith.constant 0.000000e+00 : f32
      %18 = vector.broadcast %cst_10 : f32 to vector<1x128xf32>
      %c0_11 = arith.constant 0 : index
      %c0_12 = arith.constant 0 : index
      %19 = vector.load %arg16[%c0_11, %c0_12] : memref<1x128xf32, #tpu.memory_space<vmem>>, vector<1x128xf32>
      tpu.vector_store %arg16[%c0_11, %c0_12], %18 {strides = array<i32>} : memref<1x128xf32, #tpu.memory_space<vmem>>, vector<1x128xf32>,
      %cst_13 = arith.constant 0.000000e+00 : f32
      %20 = vector.broadcast %cst_13 : f32 to vector<1x128xf32>
      %c0_14 = arith.constant 0 : index
      %c0_15 = arith.constant 0 : index
      %21 = vector.load %arg17[%c0_14, %c0_15] : memref<1x128xf32, #tpu.memory_space<vmem>>, vector<1x128xf32>
      tpu.vector_store %arg17[%c0_14, %c0_15], %20 {strides = array<i32>} : memref<1x128xf32, #tpu.memory_space<vmem>>, vector<1x128xf32>,
    } else {
    }
    %c0_i32_2 = arith.constant 0 : i32
    %5 = arith.cmpi eq, %arg0, %c0_i32_2 : i32
    %6 = arith.extui %5 : i1 to i32
    %c0_i32_3 = arith.constant 0 : i32
    %7 = arith.cmpi ne, %6, %c0_i32_3 : i32
    scf.if %7 {
      %c0 = arith.constant 0 : index
      %c0_6 = arith.constant 0 : index
      %14 = vector.load %arg2[%c0, %c0_6] : memref<8x128xbf16, #tpu.memory_space<vmem>>, vector<8x128xbf16>
      %c0_7 = arith.constant 0 : index
      %c0_8 = arith.constant 0 : index
      %15 = vector.load %arg3[%c0_7, %c0_8] : memref<128x128xbf16, #tpu.memory_space<vmem>>, vector<128x128xbf16>
      %cst = arith.constant dense<0.000000e+00> : vector<8x128xf32>
      %16 = tpu.matmul %14, %15, %cst {dimension_numbers = #tpu.dot_dimension_numbers<[1], [0], [0], [1], [0, 0, 1, 1], [], []>} : vector<8x128xbf16>, vector<128x128xbf16>, vector<8x128xf32> -> vector<8x128xf32>
      %c0_9 = arith.constant 0 : index
      %c0_10 = arith.constant 0 : index
      %17 = vector.load %arg4[%c0_9, %c0_10] : memref<1x128xf32, #tpu.memory_space<vmem>>, vector<1x128xf32>
      %18 = vector.broadcast %17 : vector<1x128xf32> to vector<8x128xf32>
      %19 = arith.addf %16, %18 : vector<8x128xf32>
      %20 = tpu.iota {dimensions = array<i32: 0>} : vector<8x1xi32>
      %c8_i32 = arith.constant 8 : i32
      %21 = arith.muli %arg1, %c8_i32 : i32
      %22 = vector.broadcast %21 : i32 to vector<8x1xi32>
      %23 = arith.addi %20, %22 : vector<8x1xi32>
      %c8_i32_11 = arith.constant 8 : i32
      %24 = vector.broadcast %c8_i32_11 : i32 to vector<8x1xi32>
      %25 = arith.cmpi slt, %23, %24 : vector<8x1xi32>
      %26 = arith.extui %25 : vector<8x1xi1> to vector<8x1xi32>
      %27 = arith.sitofp %26 : vector<8x1xi32> to vector<8x1xf32>
      %28 = vector.broadcast %27 : vector<8x1xf32> to vector<8x128xf32>
      %29 = arith.mulf %19, %28 : vector<8x128xf32>
      %c0_12 = arith.constant 0 : index
      %c0_13 = arith.constant 0 : index
      %30 = vector.load %arg14[%c0_12, %c0_13] : memref<1x128xf32, #tpu.memory_space<vmem>>, vector<1x128xf32>
      %cst_14 = arith.constant dense<0.000000e+00> : vector<128xf32>
      %31 = vector.multi_reduction <add>, %29, %cst_14 [0] : vector<8x128xf32> to vector<128xf32>
      %32 = vector.shape_cast %31 : vector<128xf32> to vector<1x128xf32>
      %33 = arith.addf %30, %32 : vector<1x128xf32>
      %c0_15 = arith.constant 0 : index
      %c0_16 = arith.constant 0 : index
      %34 = vector.load %arg14[%c0_15, %c0_16] : memref<1x128xf32, #tpu.memory_space<vmem>>, vector<1x128xf32>
      tpu.vector_store %arg14[%c0_15, %c0_16], %33 {strides = array<i32>} : memref<1x128xf32, #tpu.memory_space<vmem>>, vector<1x128xf32>,
      %c0_17 = arith.constant 0 : index
      %c0_18 = arith.constant 0 : index
      %35 = vector.load %arg15[%c0_17, %c0_18] : memref<1x128xf32, #tpu.memory_space<vmem>>, vector<1x128xf32>
      %36 = arith.mulf %19, %29 : vector<8x128xf32>
      %cst_19 = arith.constant dense<0.000000e+00> : vector<128xf32>
      %37 = vector.multi_reduction <add>, %36, %cst_19 [0] : vector<8x128xf32> to vector<128xf32>
      %38 = vector.shape_cast %37 : vector<128xf32> to vector<1x128xf32>
      %39 = arith.addf %35, %38 : vector<1x128xf32>
      %c0_20 = arith.constant 0 : index
      %c0_21 = arith.constant 0 : index
      %40 = vector.load %arg15[%c0_20, %c0_21] : memref<1x128xf32, #tpu.memory_space<vmem>>, vector<1x128xf32>
      tpu.vector_store %arg15[%c0_20, %c0_21], %39 {strides = array<i32>} : memref<1x128xf32, #tpu.memory_space<vmem>>, vector<1x128xf32>,
      %cst_22 = arith.constant 0.000000e+00 : f32
      %41 = vector.broadcast %cst_22 : f32 to vector<8x128xf32>
      %c0_23 = arith.constant 0 : index
      %c0_24 = arith.constant 0 : index
      %42 = vector.load %arg13[%c0_23, %c0_24] : memref<8x128xf32, #tpu.memory_space<vmem>>, vector<8x128xf32>
      tpu.vector_store %arg13[%c0_23, %c0_24], %41 {strides = array<i32>} : memref<8x128xf32, #tpu.memory_space<vmem>>, vector<8x128xf32>,
    } else {
    }
    %c1_i32 = arith.constant 1 : i32
    %8 = arith.cmpi eq, %arg0, %c1_i32 : i32
    %9 = arith.extui %8 : i1 to i32
    %c0_i32_4 = arith.constant 0 : i32
    %10 = arith.cmpi ne, %9, %c0_i32_4 : i32
    scf.if %10 {
      %c0 = arith.constant 0 : index
      %c0_6 = arith.constant 0 : index
      %14 = vector.load %arg2[%c0, %c0_6] : memref<8x128xbf16, #tpu.memory_space<vmem>>, vector<8x128xbf16>
      %c0_7 = arith.constant 0 : index
      %c0_8 = arith.constant 0 : index
      %15 = vector.load %arg3[%c0_7, %c0_8] : memref<128x128xbf16, #tpu.memory_space<vmem>>, vector<128x128xbf16>
      %cst = arith.constant dense<0.000000e+00> : vector<8x128xf32>
      %16 = tpu.matmul %14, %15, %cst {dimension_numbers = #tpu.dot_dimension_numbers<[1], [0], [0], [1], [0, 0, 1, 1], [], []>} : vector<8x128xbf16>, vector<128x128xbf16>, vector<8x128xf32> -> vector<8x128xf32>
      %c0_9 = arith.constant 0 : index
      %c0_10 = arith.constant 0 : index
      %17 = vector.load %arg4[%c0_9, %c0_10] : memref<1x128xf32, #tpu.memory_space<vmem>>, vector<1x128xf32>
      %18 = vector.broadcast %17 : vector<1x128xf32> to vector<8x128xf32>
      %19 = arith.addf %16, %18 : vector<8x128xf32>
      %c0_11 = arith.constant 0 : index
      %c0_12 = arith.constant 0 : index
      %20 = vector.load %arg14[%c0_11, %c0_12] : memref<1x128xf32, #tpu.memory_space<vmem>>, vector<1x128xf32>
      %cst_13 = arith.constant 1.250000e-01 : f32
      %21 = vector.broadcast %cst_13 : f32 to vector<1x128xf32>
      %22 = arith.mulf %20, %21 : vector<1x128xf32>
      %c0_14 = arith.constant 0 : index
      %c0_15 = arith.constant 0 : index
      %23 = vector.load %arg15[%c0_14, %c0_15] : memref<1x128xf32, #tpu.memory_space<vmem>>, vector<1x128xf32>
      %cst_16 = arith.constant 1.250000e-01 : f32
      %24 = vector.broadcast %cst_16 : f32 to vector<1x128xf32>
      %25 = arith.mulf %23, %24 : vector<1x128xf32>
      %26 = arith.mulf %22, %22 : vector<1x128xf32>
      %27 = arith.subf %25, %26 : vector<1x128xf32>
      %cst_17 = arith.constant 0.000000e+00 : f32
      %28 = vector.broadcast %cst_17 : f32 to vector<1x128xf32>
      %29 = arith.maximumf %27, %28 : vector<1x128xf32>
      %30 = vector.broadcast %22 : vector<1x128xf32> to vector<8x128xf32>
      %31 = arith.subf %19, %30 : vector<8x128xf32>
      %cst_18 = arith.constant 9.99999974E-6 : f32
      %32 = vector.broadcast %cst_18 : f32 to vector<1x128xf32>
      %33 = arith.addf %29, %32 : vector<1x128xf32>
      %34 = math.rsqrt %33 : vector<1x128xf32>
      %35 = vector.broadcast %34 : vector<1x128xf32> to vector<8x128xf32>
      %36 = arith.mulf %31, %35 : vector<8x128xf32>
      %c0_19 = arith.constant 0 : index
      %c0_20 = arith.constant 0 : index
      %37 = vector.load %arg5[%c0_19, %c0_20] : memref<1x128xf32, #tpu.memory_space<vmem>>, vector<1x128xf32>
      %38 = vector.broadcast %37 : vector<1x128xf32> to vector<8x128xf32>
      %39 = arith.mulf %36, %38 : vector<8x128xf32>
      %c0_21 = arith.constant 0 : index
      %c0_22 = arith.constant 0 : index
      %40 = vector.load %arg6[%c0_21, %c0_22] : memref<1x128xf32, #tpu.memory_space<vmem>>, vector<1x128xf32>
      %41 = vector.broadcast %40 : vector<1x128xf32> to vector<8x128xf32>
      %42 = arith.addf %39, %41 : vector<8x128xf32>
      %cst_23 = arith.constant 0.000000e+00 : f32
      %43 = vector.broadcast %cst_23 : f32 to vector<8x128xf32>
      %44 = arith.maximumf %42, %43 : vector<8x128xf32>
      %45 = arith.truncf %44 : vector<8x128xf32> to vector<8x128xbf16>
      %c0_24 = arith.constant 0 : index
      %c0_25 = arith.constant 0 : index
      %46 = vector.load %arg7[%c0_24, %c0_25] : memref<128x128xbf16, #tpu.memory_space<vmem>>, vector<128x128xbf16>
      %cst_26 = arith.constant dense<0.000000e+00> : vector<8x128xf32>
      %47 = tpu.matmul %45, %46, %cst_26 {dimension_numbers = #tpu.dot_dimension_numbers<[1], [0], [0], [1], [0, 0, 1, 1], [], []>} : vector<8x128xbf16>, vector<128x128xbf16>, vector<8x128xf32> -> vector<8x128xf32>
      %c0_27 = arith.constant 0 : index
      %c0_28 = arith.constant 0 : index
      %48 = vector.load %arg8[%c0_27, %c0_28] : memref<1x128xf32, #tpu.memory_space<vmem>>, vector<1x128xf32>
      %49 = vector.broadcast %48 : vector<1x128xf32> to vector<8x128xf32>
      %50 = arith.addf %47, %49 : vector<8x128xf32>
      %51 = tpu.iota {dimensions = array<i32: 0>} : vector<8x1xi32>
      %c8_i32 = arith.constant 8 : i32
      %52 = arith.muli %arg1, %c8_i32 : i32
      %53 = vector.broadcast %52 : i32 to vector<8x1xi32>
      %54 = arith.addi %51, %53 : vector<8x1xi32>
      %c8_i32_29 = arith.constant 8 : i32
      %55 = vector.broadcast %c8_i32_29 : i32 to vector<8x1xi32>
      %56 = arith.cmpi slt, %54, %55 : vector<8x1xi32>
      %57 = arith.extui %56 : vector<8x1xi1> to vector<8x1xi32>
      %58 = arith.sitofp %57 : vector<8x1xi32> to vector<8x1xf32>
      %59 = vector.broadcast %58 : vector<8x1xf32> to vector<8x128xf32>
      %60 = arith.mulf %50, %59 : vector<8x128xf32>
      %c0_30 = arith.constant 0 : index
      %c0_31 = arith.constant 0 : index
      %61 = vector.load %arg16[%c0_30, %c0_31] : memref<1x128xf32, #tpu.memory_space<vmem>>, vector<1x128xf32>
      %cst_32 = arith.constant dense<0.000000e+00> : vector<128xf32>
      %62 = vector.multi_reduction <add>, %60, %cst_32 [0] : vector<8x128xf32> to vector<128xf32>
      %63 = vector.shape_cast %62 : vector<128xf32> to vector<1x128xf32>
      %64 = arith.addf %61, %63 : vector<1x128xf32>
      %c0_33 = arith.constant 0 : index
      %c0_34 = arith.constant 0 : index
      %65 = vector.load %arg16[%c0_33, %c0_34] : memref<1x128xf32, #tpu.memory_space<vmem>>, vector<1x128xf32>
      tpu.vector_store %arg16[%c0_33, %c0_34], %64 {strides = array<i32>} : memref<1x128xf32, #tpu.memory_space<vmem>>, vector<1x128xf32>,
      %c0_35 = arith.constant 0 : index
      %c0_36 = arith.constant 0 : index
      %66 = vector.load %arg17[%c0_35, %c0_36] : memref<1x128xf32, #tpu.memory_space<vmem>>, vector<1x128xf32>
      %67 = arith.mulf %50, %60 : vector<8x128xf32>
      %cst_37 = arith.constant dense<0.000000e+00> : vector<128xf32>
      %68 = vector.multi_reduction <add>, %67, %cst_37 [0] : vector<8x128xf32> to vector<128xf32>
      %69 = vector.shape_cast %68 : vector<128xf32> to vector<1x128xf32>
      %70 = arith.addf %66, %69 : vector<1x128xf32>
      %c0_38 = arith.constant 0 : index
      %c0_39 = arith.constant 0 : index
      %71 = vector.load %arg17[%c0_38, %c0_39] : memref<1x128xf32, #tpu.memory_space<vmem>>, vector<1x128xf32>
      tpu.vector_store %arg17[%c0_38, %c0_39], %70 {strides = array<i32>} : memref<1x128xf32, #tpu.memory_space<vmem>>, vector<1x128xf32>,
      %cst_40 = arith.constant 0.000000e+00 : f32
      %72 = vector.broadcast %cst_40 : f32 to vector<8x128xf32>
      %c0_41 = arith.constant 0 : index
      %c0_42 = arith.constant 0 : index
      %73 = vector.load %arg13[%c0_41, %c0_42] : memref<8x128xf32, #tpu.memory_space<vmem>>, vector<8x128xf32>
      tpu.vector_store %arg13[%c0_41, %c0_42], %72 {strides = array<i32>} : memref<8x128xf32, #tpu.memory_space<vmem>>, vector<8x128xf32>,
    } else {
    }
    %c2_i32 = arith.constant 2 : i32
    %11 = arith.cmpi eq, %arg0, %c2_i32 : i32
    %12 = arith.extui %11 : i1 to i32
    %c0_i32_5 = arith.constant 0 : i32
    %13 = arith.cmpi ne, %12, %c0_i32_5 : i32
    scf.if %13 {
      %c0 = arith.constant 0 : index
      %c0_6 = arith.constant 0 : index
      %14 = vector.load %arg2[%c0, %c0_6] : memref<8x128xbf16, #tpu.memory_space<vmem>>, vector<8x128xbf16>
      %c0_7 = arith.constant 0 : index
      %c0_8 = arith.constant 0 : index
      %15 = vector.load %arg3[%c0_7, %c0_8] : memref<128x128xbf16, #tpu.memory_space<vmem>>, vector<128x128xbf16>
      %cst = arith.constant dense<0.000000e+00> : vector<8x128xf32>
      %16 = tpu.matmul %14, %15, %cst {dimension_numbers = #tpu.dot_dimension_numbers<[1], [0], [0], [1], [0, 0, 1, 1], [], []>} : vector<8x128xbf16>, vector<128x128xbf16>, vector<8x128xf32> -> vector<8x128xf32>
      %c0_9 = arith.constant 0 : index
      %c0_10 = arith.constant 0 : index
      %17 = vector.load %arg4[%c0_9, %c0_10] : memref<1x128xf32, #tpu.memory_space<vmem>>, vector<1x128xf32>
      %18 = vector.broadcast %17 : vector<1x128xf32> to vector<8x128xf32>
      %19 = arith.addf %16, %18 : vector<8x128xf32>
      %c0_11 = arith.constant 0 : index
      %c0_12 = arith.constant 0 : index
      %20 = vector.load %arg14[%c0_11, %c0_12] : memref<1x128xf32, #tpu.memory_space<vmem>>, vector<1x128xf32>
      %cst_13 = arith.constant 1.250000e-01 : f32
      %21 = vector.broadcast %cst_13 : f32 to vector<1x128xf32>
      %22 = arith.mulf %20, %21 : vector<1x128xf32>
      %c0_14 = arith.constant 0 : index
      %c0_15 = arith.constant 0 : index
      %23 = vector.load %arg15[%c0_14, %c0_15] : memref<1x128xf32, #tpu.memory_space<vmem>>, vector<1x128xf32>
      %cst_16 = arith.constant 1.250000e-01 : f32
      %24 = vector.broadcast %cst_16 : f32 to vector<1x128xf32>
      %25 = arith.mulf %23, %24 : vector<1x128xf32>
      %26 = arith.mulf %22, %22 : vector<1x128xf32>
      %27 = arith.subf %25, %26 : vector<1x128xf32>
      %cst_17 = arith.constant 0.000000e+00 : f32
      %28 = vector.broadcast %cst_17 : f32 to vector<1x128xf32>
      %29 = arith.maximumf %27, %28 : vector<1x128xf32>
      %30 = vector.broadcast %22 : vector<1x128xf32> to vector<8x128xf32>
      %31 = arith.subf %19, %30 : vector<8x128xf32>
      %cst_18 = arith.constant 9.99999974E-6 : f32
      %32 = vector.broadcast %cst_18 : f32 to vector<1x128xf32>
      %33 = arith.addf %29, %32 : vector<1x128xf32>
      %34 = math.rsqrt %33 : vector<1x128xf32>
      %35 = vector.broadcast %34 : vector<1x128xf32> to vector<8x128xf32>
      %36 = arith.mulf %31, %35 : vector<8x128xf32>
      %c0_19 = arith.constant 0 : index
      %c0_20 = arith.constant 0 : index
      %37 = vector.load %arg5[%c0_19, %c0_20] : memref<1x128xf32, #tpu.memory_space<vmem>>, vector<1x128xf32>
      %38 = vector.broadcast %37 : vector<1x128xf32> to vector<8x128xf32>
      %39 = arith.mulf %36, %38 : vector<8x128xf32>
      %c0_21 = arith.constant 0 : index
      %c0_22 = arith.constant 0 : index
      %40 = vector.load %arg6[%c0_21, %c0_22] : memref<1x128xf32, #tpu.memory_space<vmem>>, vector<1x128xf32>
      %41 = vector.broadcast %40 : vector<1x128xf32> to vector<8x128xf32>
      %42 = arith.addf %39, %41 : vector<8x128xf32>
      %cst_23 = arith.constant 0.000000e+00 : f32
      %43 = vector.broadcast %cst_23 : f32 to vector<8x128xf32>
      %44 = arith.maximumf %42, %43 : vector<8x128xf32>
      %45 = arith.truncf %44 : vector<8x128xf32> to vector<8x128xbf16>
      %c0_24 = arith.constant 0 : index
      %c0_25 = arith.constant 0 : index
      %46 = vector.load %arg7[%c0_24, %c0_25] : memref<128x128xbf16, #tpu.memory_space<vmem>>, vector<128x128xbf16>
      %cst_26 = arith.constant dense<0.000000e+00> : vector<8x128xf32>
      %47 = tpu.matmul %45, %46, %cst_26 {dimension_numbers = #tpu.dot_dimension_numbers<[1], [0], [0], [1], [0, 0, 1, 1], [], []>} : vector<8x128xbf16>, vector<128x128xbf16>, vector<8x128xf32> -> vector<8x128xf32>
      %c0_27 = arith.constant 0 : index
      %c0_28 = arith.constant 0 : index
      %48 = vector.load %arg8[%c0_27, %c0_28] : memref<1x128xf32, #tpu.memory_space<vmem>>, vector<1x128xf32>
      %49 = vector.broadcast %48 : vector<1x128xf32> to vector<8x128xf32>
      %50 = arith.addf %47, %49 : vector<8x128xf32>
      %c0_29 = arith.constant 0 : index
      %c0_30 = arith.constant 0 : index
      %51 = vector.load %arg16[%c0_29, %c0_30] : memref<1x128xf32, #tpu.memory_space<vmem>>, vector<1x128xf32>
      %cst_31 = arith.constant 1.250000e-01 : f32
      %52 = vector.broadcast %cst_31 : f32 to vector<1x128xf32>
      %53 = arith.mulf %51, %52 : vector<1x128xf32>
      %c0_32 = arith.constant 0 : index
      %c0_33 = arith.constant 0 : index
      %54 = vector.load %arg17[%c0_32, %c0_33] : memref<1x128xf32, #tpu.memory_space<vmem>>, vector<1x128xf32>
      %cst_34 = arith.constant 1.250000e-01 : f32
      %55 = vector.broadcast %cst_34 : f32 to vector<1x128xf32>
      %56 = arith.mulf %54, %55 : vector<1x128xf32>
      %57 = arith.mulf %53, %53 : vector<1x128xf32>
      %58 = arith.subf %56, %57 : vector<1x128xf32>
      %cst_35 = arith.constant 0.000000e+00 : f32
      %59 = vector.broadcast %cst_35 : f32 to vector<1x128xf32>
      %60 = arith.maximumf %58, %59 : vector<1x128xf32>
      %61 = vector.broadcast %53 : vector<1x128xf32> to vector<8x128xf32>
      %62 = arith.subf %50, %61 : vector<8x128xf32>
      %cst_36 = arith.constant 9.99999974E-6 : f32
      %63 = vector.broadcast %cst_36 : f32 to vector<1x128xf32>
      %64 = arith.addf %60, %63 : vector<1x128xf32>
      %65 = math.rsqrt %64 : vector<1x128xf32>
      %66 = vector.broadcast %65 : vector<1x128xf32> to vector<8x128xf32>
      %67 = arith.mulf %62, %66 : vector<8x128xf32>
      %c0_37 = arith.constant 0 : index
      %c0_38 = arith.constant 0 : index
      %68 = vector.load %arg9[%c0_37, %c0_38] : memref<1x128xf32, #tpu.memory_space<vmem>>, vector<1x128xf32>
      %69 = vector.broadcast %68 : vector<1x128xf32> to vector<8x128xf32>
      %70 = arith.mulf %67, %69 : vector<8x128xf32>
      %c0_39 = arith.constant 0 : index
      %c0_40 = arith.constant 0 : index
      %71 = vector.load %arg10[%c0_39, %c0_40] : memref<1x128xf32, #tpu.memory_space<vmem>>, vector<1x128xf32>
      %72 = vector.broadcast %71 : vector<1x128xf32> to vector<8x128xf32>
      %73 = arith.addf %70, %72 : vector<8x128xf32>
      %cst_41 = arith.constant 0.000000e+00 : f32
      %74 = vector.broadcast %cst_41 : f32 to vector<8x128xf32>
      %75 = arith.maximumf %73, %74 : vector<8x128xf32>
      %76 = arith.truncf %75 : vector<8x128xf32> to vector<8x128xbf16>
      %c0_42 = arith.constant 0 : index
      %c0_43 = arith.constant 0 : index
      %77 = vector.load %arg11[%c0_42, %c0_43] : memref<128x128xbf16, #tpu.memory_space<vmem>>, vector<128x128xbf16>
      %cst_44 = arith.constant dense<0.000000e+00> : vector<8x128xf32>
      %78 = tpu.matmul %76, %77, %cst_44 {dimension_numbers = #tpu.dot_dimension_numbers<[1], [0], [0], [1], [0, 0, 1, 1], [], []>} : vector<8x128xbf16>, vector<128x128xbf16>, vector<8x128xf32> -> vector<8x128xf32>
      %c0_45 = arith.constant 0 : index
      %c0_46 = arith.constant 0 : index
      %79 = vector.load %arg12[%c0_45, %c0_46] : memref<1x128xf32, #tpu.memory_space<vmem>>, vector<1x128xf32>
      %80 = vector.broadcast %79 : vector<1x128xf32> to vector<8x128xf32>
      %81 = arith.addf %78, %80 : vector<8x128xf32>
      %82 = arith.mulf %81, %81 : vector<8x128xf32>
      %cst_47 = arith.constant dense<0.000000e+00> : vector<8xf32>
      %83 = vector.multi_reduction <add>, %82, %cst_47 [1] : vector<8x128xf32> to vector<8xf32>
      %84 = vector.shape_cast %83 : vector<8xf32> to vector<8x1xf32>
      %cst_48 = arith.constant 1.000000e-24 : f32
      %85 = vector.broadcast %cst_48 : f32 to vector<8x1xf32>
      %86 = arith.maximumf %84, %85 : vector<8x1xf32>
      %87 = math.rsqrt %86 : vector<8x1xf32>
      %88 = vector.broadcast %87 : vector<8x1xf32> to vector<8x128xf32>
      %89 = arith.mulf %81, %88 : vector<8x128xf32>
      %c0_49 = arith.constant 0 : index
      %c0_50 = arith.constant 0 : index
      %90 = vector.load %arg13[%c0_49, %c0_50] : memref<8x128xf32, #tpu.memory_space<vmem>>, vector<8x128xf32>
      tpu.vector_store %arg13[%c0_49, %c0_50], %89 {strides = array<i32>} : memref<8x128xf32, #tpu.memory_space<vmem>>, vector<8x128xf32>,
    } else {
    }
    return
  }
  func.func @transform_0(%arg0: i32, %arg1: i32) -> (i32, i32) {
    %c0_i32 = arith.constant 0 : i32
    %c0_i32_0 = arith.constant 0 : i32
    return %arg1, %c0_i32 : i32, i32
  }
  func.func @transform_1(%arg0: i32, %arg1: i32) -> (i32, i32) {
    %c0_i32 = arith.constant 0 : i32
    %c0_i32_0 = arith.constant 0 : i32
    %c0_i32_1 = arith.constant 0 : i32
    return %c0_i32, %c0_i32_0 : i32, i32
  }
  func.func @transform_2(%arg0: i32, %arg1: i32) -> (i32, i32) {
    %c0_i32 = arith.constant 0 : i32
    %c0_i32_0 = arith.constant 0 : i32
    %c0_i32_1 = arith.constant 0 : i32
    return %c0_i32, %c0_i32_0 : i32, i32
  }
  func.func @transform_3(%arg0: i32, %arg1: i32) -> (i32, i32) {
    %c0_i32 = arith.constant 0 : i32
    %c0_i32_0 = arith.constant 0 : i32
    %c0_i32_1 = arith.constant 0 : i32
    return %c0_i32, %c0_i32_0 : i32, i32
  }
  func.func @transform_4(%arg0: i32, %arg1: i32) -> (i32, i32) {
    %c0_i32 = arith.constant 0 : i32
    %c0_i32_0 = arith.constant 0 : i32
    %c0_i32_1 = arith.constant 0 : i32
    return %c0_i32, %c0_i32_0 : i32, i32
  }
  func.func @transform_5(%arg0: i32, %arg1: i32) -> (i32, i32) {
    %c0_i32 = arith.constant 0 : i32
    %c0_i32_0 = arith.constant 0 : i32
    %c0_i32_1 = arith.constant 0 : i32
    return %c0_i32, %c0_i32_0 : i32, i32
  }
  func.func @transform_6(%arg0: i32, %arg1: i32) -> (i32, i32) {
    %c0_i32 = arith.constant 0 : i32
    %c0_i32_0 = arith.constant 0 : i32
    %c0_i32_1 = arith.constant 0 : i32
    return %c0_i32, %c0_i32_0 : i32, i32
  }
  func.func @transform_7(%arg0: i32, %arg1: i32) -> (i32, i32) {
    %c0_i32 = arith.constant 0 : i32
    %c0_i32_0 = arith.constant 0 : i32
    %c0_i32_1 = arith.constant 0 : i32
    return %c0_i32, %c0_i32_0 : i32, i32
  }
  func.func @transform_8(%arg0: i32, %arg1: i32) -> (i32, i32) {
    %c0_i32 = arith.constant 0 : i32
    %c0_i32_0 = arith.constant 0 : i32
    %c0_i32_1 = arith.constant 0 : i32
    return %c0_i32, %c0_i32_0 : i32, i32
  }
  func.func @transform_9(%arg0: i32, %arg1: i32) -> (i32, i32) {
    %c0_i32 = arith.constant 0 : i32
    %c0_i32_0 = arith.constant 0 : i32
    %c0_i32_1 = arith.constant 0 : i32
    return %c0_i32, %c0_i32_0 : i32, i32
  }
  func.func @transform_10(%arg0: i32, %arg1: i32) -> (i32, i32) {
    %c0_i32 = arith.constant 0 : i32
    %c0_i32_0 = arith.constant 0 : i32
    %c0_i32_1 = arith.constant 0 : i32
    return %c0_i32, %c0_i32_0 : i32, i32
  }
  func.func @transform_11(%arg0: i32, %arg1: i32) -> (i32, i32) {
    %c0_i32 = arith.constant 0 : i32
    %c0_i32_0 = arith.constant 0 : i32
    return %arg1, %c0_i32 : i32, i32
  }
}

</mosaic_0001>

<llo_original>
// kernel: tpu_custom_call.1
$region0: #{tpu_custom_call.1}
  #allocation0 [shape = 'u32[]', space=smem, size = 0x4, offset = 0x4, fixed_abs, tag = 'smem constant byte address 0x4 - core index']
  #allocation1 [shape = 'u32[72,128]{1,0:T(1,128)}', space=vmem, size = 0x9000, scoped, tag = 'internal scratch']
  #allocation2 [shape = 'f32[1,128]{1,0:T(1,128)}', space=vmem, size = 0x200, scoped, tag = 'scratch operand']
  #allocation3 [shape = 'f32[1,128]{1,0:T(1,128)}', space=vmem, size = 0x200, scoped, tag = 'scratch operand']
  #allocation4 [shape = 'f32[1,128]{1,0:T(1,128)}', space=vmem, size = 0x200, scoped, tag = 'scratch operand']
  #allocation5 [shape = 'f32[1,128]{1,0:T(1,128)}', space=vmem, size = 0x200, scoped, tag = 'scratch operand']
  %s0 = inlined_call_operand.hbm [shape: bf16[8,128], index: 0, kind: input, shape index: {}]
  %s1 = inlined_call_operand.hbm [shape: bf16[128,128], index: 1, kind: input, shape index: {}]
  %s2 = inlined_call_operand.vmem [shape: f32[1,128], index: 2, kind: input, shape index: {}]
  %s3 = inlined_call_operand.vmem [shape: f32[1,128], index: 3, kind: input, shape index: {}]
  %s4 = inlined_call_operand.vmem [shape: f32[1,128], index: 4, kind: input, shape index: {}]
  %s5 = inlined_call_operand.hbm [shape: bf16[128,128], index: 5, kind: input, shape index: {}]
  %s6 = inlined_call_operand.vmem [shape: f32[1,128], index: 6, kind: input, shape index: {}]
  %s7 = inlined_call_operand.vmem [shape: f32[1,128], index: 7, kind: input, shape index: {}]
  %s8 = inlined_call_operand.vmem [shape: f32[1,128], index: 8, kind: input, shape index: {}]
  %s9 = inlined_call_operand.hbm [shape: bf16[128,128], index: 9, kind: input, shape index: {}]
  %s10 = inlined_call_operand.vmem [shape: f32[1,128], index: 10, kind: input, shape index: {}]
  %s11 = inlined_call_operand.hbm [shape: f32[8,128], index: 11, kind: output, shape index: {}]
  %s12 = sld [smem:[#allocation0]]
  $region109: #{tpu_custom_call.1} parent=0
    _
  %s14 = ssub.s32 1, %s12
  %s15 = scalar_select 0, %s14, %s12
  $region1: #{tpu_custom_call.1} parent=0
    #allocation6 [shape = 'u8[2048]{0}', space=vmem, size = 0x800, scoped, tag = 'input window, operand 0, single buffered']
    #allocation7 [shape = 's32[2]{0}', space=sflag, size = 0x8, scoped, tag = 'scoped memory for tpu_custom_call.1']
    #allocation8 [shape = 's32[2]{0}', space=sflag, size = 0x8, scoped, tag = 'scoped memory for tpu_custom_call.1']
    #allocation9 [shape = 'u8[32768]{0}', space=vmem, size = 0x8000, scoped, tag = 'input window, operand 1, single buffered']
    #allocation10 [shape = 's32[1]{0}', space=sflag, size = 0x4, scoped, tag = 'scoped memory for tpu_custom_call.1']
    #allocation11 [shape = 'u8[32768]{0}', space=vmem, size = 0x8000, scoped, tag = 'input window, operand 5, single buffered']
    #allocation12 [shape = 'u8[32768]{0}', space=vmem, size = 0x8000, scoped, tag = 'input window, operand 9, single buffered']
    #allocation13 [shape = 's32[1]{0}', space=sflag, size = 0x4, scoped, tag = 'scoped memory for tpu_custom_call.1']
    #allocation14 [shape = 'u8[4096]{0}', space=vmem, size = 0x1000, scoped, tag = 'output window, operand 0, single buffered']
    %16 = vsyncpa [#allocation7], 0
    %17 = vsyncpa [#allocation10], 0
    %18 = vsyncpa [#allocation13], 0
    %19 = vsyncpa [#allocation8], 0
    loop: start=0, step=1, limit=5
    $region2: #{tpu_custom_call.1} parent=1 // loop_pre_header
      _
    $region3: #{tpu_custom_call.1} parent=1 // loop_header
      %s21 = sphi 0, %s25
      %p22 = scmp.ge.s32.totalorder %s21, 5
      %s28 = sphi 0, %s40
      %s29 = sphi 0, %s36
      %s30 = sphi 0, %s28
      %s31 = sphi 0, %s29
      %s32 = sphi 0, %s30
      %s33 = sphi 0, %s31
      %s43 = sphi 0, %s45
      %s46 = sphi 0, %s43
      %s47 = sphi 0, %s46
      %s63 = sphi 0, %s47
      %s67 = sphi 0, %s67
      %s69 = sphi 0, %s67
      %s70 = sphi 0, %s69
      %s84 = sphi 0, %s70
      %s88 = sphi 0, %s88
      %s90 = sphi 0, %s88
      %s91 = sphi 0, %s90
      %s105 = sphi 0, %s91
      %s109 = sphi 0, %s109
      %s111 = sphi 0, %s109
      %s112 = sphi 0, %s111
      %s126 = sphi 0, %s112
      %s130 = sphi 0, %s130
      %s132 = sphi 0, %s130
      %s133 = sphi 0, %s132
      %s147 = sphi 0, %s133
      %s151 = sphi 0, %s151
      %s153 = sphi 0, %s151
      %s154 = sphi 0, %s153
      %s168 = sphi 0, %s154
      %s172 = sphi 0, %s172
      %s174 = sphi 0, %s172
      %s175 = sphi 0, %s174
      %s189 = sphi 0, %s175
      %s193 = sphi 0, %s193
      %s195 = sphi 0, %s193
      %s196 = sphi 0, %s195
      %s210 = sphi 0, %s196
      %s214 = sphi 0, %s214
      %s216 = sphi 0, %s214
      %s217 = sphi 0, %s216
      %s231 = sphi 0, %s217
      %s235 = sphi 0, %s235
      %s237 = sphi 0, %s235
      %s238 = sphi 0, %s237
      %s252 = sphi 0, %s238
      %s256 = sphi 0, %s256
      %s258 = sphi 0, %s256
      %s259 = sphi 0, %s258
      %s273 = sphi 0, %s259
      %s279 = sphi 0, %s281
      %s282 = sphi 0, %s279
      %s283 = sphi 0, %s282
      %s299 = sphi 0, %s283
    $region4: #{tpu_custom_call.1} parent=1 // loop_header_branch
      %24 = sbr.rel (%p22) target = $region8
    $region5: #{tpu_custom_call.1} parent=1 // loop_body
      %s26 = ssub.s32 %s21, 1
      %s27 = ssub.s32 %s21, 2
      %s34 = sadd.s32 1, %s29
      %p35 = scmp.ge.s32.totalorder %s34, 1
      %s36 = scalar_select %p35, 0, %s34
      %s37 = sadd.s32 1, %s28
      %s38 = scalar_select %p35, %s37, %s28
      %p39 = scmp.ge.s32.totalorder %s38, 3
      %s40 = scalar_select %p39, 0, %s38
      %s41 = ssub.s32 %s29, %s36
      %p42 = scmp.eq.s32.totalorder %s41, 0
      %s44 = sadd.s32 %s43, 1
      %s45 = scalar_select %p42, %s43, %s44
      %p48 = pneg %p42
      %p49 = scmp.eq.s32.totalorder %s21, 2
      %p50 = por %p48, %p49
      %p51 = scmp.ne.s32.totalorder %s43, %s46
      %p52 = scmp.eq.s32.totalorder %s21, 0
      %p53 = por %p51, %p52
      %p54 = scmp.ne.s32.totalorder %s43, %s46
      %p55 = scmp.eq.s32.totalorder %s26, 2
      %p56 = por %p54, %p55
      %p57 = scmp.ne.s32.totalorder %s46, %s47
      %p58 = scmp.eq.s32.totalorder %s26, 0
      %p59 = por %p57, %p58
      %p60 = scmp.ne.s32.totalorder %s46, %s47
      %p61 = scmp.eq.s32.totalorder %s27, 2
      %p62 = por %p60, %p61
      %p64 = scmp.ne.s32.totalorder %s47, %s63
      %p65 = scmp.eq.s32.totalorder %s27, 0
      %p66 = por %p64, %p65
      %s68 = sadd.s32 %s67, 1
      %p71 = scmp.eq.s32.totalorder %s21, 2
      %p72 = scmp.ne.s32.totalorder %s67, %s69
      %p73 = scmp.eq.s32.totalorder %s21, 0
      %p74 = por %p72, %p73
      %p75 = scmp.ne.s32.totalorder %s67, %s69
      %p76 = scmp.eq.s32.totalorder %s26, 2
      %p77 = por %p75, %p76
      %p78 = scmp.ne.s32.totalorder %s69, %s70
      %p79 = scmp.eq.s32.totalorder %s26, 0
      %p80 = por %p78, %p79
      %p81 = scmp.ne.s32.totalorder %s69, %s70
      %p82 = scmp.eq.s32.totalorder %s27, 2
      %p83 = por %p81, %p82
      %p85 = scmp.ne.s32.totalorder %s70, %s84
      %p86 = scmp.eq.s32.totalorder %s27, 0
      %p87 = por %p85, %p86
      %s89 = sadd.s32 %s88, 1
      %p92 = scmp.eq.s32.totalorder %s21, 2
      %p93 = scmp.ne.s32.totalorder %s88, %s90
      %p94 = scmp.eq.s32.totalorder %s21, 0
      %p95 = por %p93, %p94
      %p96 = scmp.ne.s32.totalorder %s88, %s90
      %p97 = scmp.eq.s32.totalorder %s26, 2
      %p98 = por %p96, %p97
      %p99 = scmp.ne.s32.totalorder %s90, %s91
      %p100 = scmp.eq.s32.totalorder %s26, 0
      %p101 = por %p99, %p100
      %p102 = scmp.ne.s32.totalorder %s90, %s91
      %p103 = scmp.eq.s32.totalorder %s27, 2
      %p104 = por %p102, %p103
      %p106 = scmp.ne.s32.totalorder %s91, %s105
      %p107 = scmp.eq.s32.totalorder %s27, 0
      %p108 = por %p106, %p107
      %s110 = sadd.s32 %s109, 1
      %p113 = scmp.eq.s32.totalorder %s21, 2
      %p114 = scmp.ne.s32.totalorder %s109, %s111
      %p115 = scmp.eq.s32.totalorder %s21, 0
      %p116 = por %p114, %p115
      %p117 = scmp.ne.s32.totalorder %s109, %s111
      %p118 = scmp.eq.s32.totalorder %s26, 2
      %p119 = por %p117, %p118
      %p120 = scmp.ne.s32.totalorder %s111, %s112
      %p121 = scmp.eq.s32.totalorder %s26, 0
      %p122 = por %p120, %p121
      %p123 = scmp.ne.s32.totalorder %s111, %s112
      %p124 = scmp.eq.s32.totalorder %s27, 2
      %p125 = por %p123, %p124
      %p127 = scmp.ne.s32.totalorder %s112, %s126
      %p128 = scmp.eq.s32.totalorder %s27, 0
      %p129 = por %p127, %p128
      %s131 = sadd.s32 %s130, 1
      %p134 = scmp.eq.s32.totalorder %s21, 2
      %p135 = scmp.ne.s32.totalorder %s130, %s132
      %p136 = scmp.eq.s32.totalorder %s21, 0
      %p137 = por %p135, %p136
      %p138 = scmp.ne.s32.totalorder %s130, %s132
      %p139 = scmp.eq.s32.totalorder %s26, 2
      %p140 = por %p138, %p139
      %p141 = scmp.ne.s32.totalorder %s132, %s133
      %p142 = scmp.eq.s32.totalorder %s26, 0
      %p143 = por %p141, %p142
      %p144 = scmp.ne.s32.totalorder %s132, %s133
      %p145 = scmp.eq.s32.totalorder %s27, 2
      %p146 = por %p144, %p145
      %p148 = scmp.ne.s32.totalorder %s133, %s147
      %p149 = scmp.eq.s32.totalorder %s27, 0
      %p150 = por %p148, %p149
      %s152 = sadd.s32 %s151, 1
      %p155 = scmp.eq.s32.totalorder %s21, 2
      %p156 = scmp.ne.s32.totalorder %s151, %s153
      %p157 = scmp.eq.s32.totalorder %s21, 0
      %p158 = por %p156, %p157
      %p159 = scmp.ne.s32.totalorder %s151, %s153
      %p160 = scmp.eq.s32.totalorder %s26, 2
      %p161 = por %p159, %p160
      %p162 = scmp.ne.s32.totalorder %s153, %s154
      %p163 = scmp.eq.s32.totalorder %s26, 0
      %p164 = por %p162, %p163
      %p165 = scmp.ne.s32.totalorder %s153, %s154
      %p166 = scmp.eq.s32.totalorder %s27, 2
      %p167 = por %p165, %p166
      %p169 = scmp.ne.s32.totalorder %s154, %s168
      %p170 = scmp.eq.s32.totalorder %s27, 0
      %p171 = por %p169, %p170
      %s173 = sadd.s32 %s172, 1
      %p176 = scmp.eq.s32.totalorder %s21, 2
      %p177 = scmp.ne.s32.totalorder %s172, %s174
      %p178 = scmp.eq.s32.totalorder %s21, 0
      %p179 = por %p177, %p178
      %p180 = scmp.ne.s32.totalorder %s172, %s174
      %p181 = scmp.eq.s32.totalorder %s26, 2
      %p182 = por %p180, %p181
      %p183 = scmp.ne.s32.totalorder %s174, %s175
      %p184 = scmp.eq.s32.totalorder %s26, 0
      %p185 = por %p183, %p184
      %p186 = scmp.ne.s32.totalorder %s174, %s175
      %p187 = scmp.eq.s32.totalorder %s27, 2
      %p188 = por %p186, %p187
      %p190 = scmp.ne.s32.totalorder %s175, %s189
      %p191 = scmp.eq.s32.totalorder %s27, 0
      %p192 = por %p190, %p191
      %s194 = sadd.s32 %s193, 1
      %p197 = scmp.eq.s32.totalorder %s21, 2
      %p198 = scmp.ne.s32.totalorder %s193, %s195
      %p199 = scmp.eq.s32.totalorder %s21, 0
      %p200 = por %p198, %p199
      %p201 = scmp.ne.s32.totalorder %s193, %s195
      %p202 = scmp.eq.s32.totalorder %s26, 2
      %p203 = por %p201, %p202
      %p204 = scmp.ne.s32.totalorder %s195, %s196
      %p205 = scmp.eq.s32.totalorder %s26, 0
      %p206 = por %p204, %p205
      %p207 = scmp.ne.s32.totalorder %s195, %s196
      %p208 = scmp.eq.s32.totalorder %s27, 2
      %p209 = por %p207, %p208
      %p211 = scmp.ne.s32.totalorder %s196, %s210
      %p212 = scmp.eq.s32.totalorder %s27, 0
      %p213 = por %p211, %p212
      %s215 = sadd.s32 %s214, 1
      %p218 = scmp.eq.s32.totalorder %s21, 2
      %p219 = scmp.ne.s32.totalorder %s214, %s216
      %p220 = scmp.eq.s32.totalorder %s21, 0
      %p221 = por %p219, %p220
      %p222 = scmp.ne.s32.totalorder %s214, %s216
      %p223 = scmp.eq.s32.totalorder %s26, 2
      %p224 = por %p222, %p223
      %p225 = scmp.ne.s32.totalorder %s216, %s217
      %p226 = scmp.eq.s32.totalorder %s26, 0
      %p227 = por %p225, %p226
      %p228 = scmp.ne.s32.totalorder %s216, %s217
      %p229 = scmp.eq.s32.totalorder %s27, 2
      %p230 = por %p228, %p229
      %p232 = scmp.ne.s32.totalorder %s217, %s231
      %p233 = scmp.eq.s32.totalorder %s27, 0
      %p234 = por %p232, %p233
      %s236 = sadd.s32 %s235, 1
      %p239 = scmp.eq.s32.totalorder %s21, 2
      %p240 = scmp.ne.s32.totalorder %s235, %s237
      %p241 = scmp.eq.s32.totalorder %s21, 0
      %p242 = por %p240, %p241
      %p243 = scmp.ne.s32.totalorder %s235, %s237
      %p244 = scmp.eq.s32.totalorder %s26, 2
      %p245 = por %p243, %p244
      %p246 = scmp.ne.s32.totalorder %s237, %s238
      %p247 = scmp.eq.s32.totalorder %s26, 0
      %p248 = por %p246, %p247
      %p249 = scmp.ne.s32.totalorder %s237, %s238
      %p250 = scmp.eq.s32.totalorder %s27, 2
      %p251 = por %p249, %p250
      %p253 = scmp.ne.s32.totalorder %s238, %s252
      %p254 = scmp.eq.s32.totalorder %s27, 0
      %p255 = por %p253, %p254
      %s257 = sadd.s32 %s256, 1
      %p260 = scmp.eq.s32.totalorder %s21, 2
      %p261 = scmp.ne.s32.totalorder %s256, %s258
      %p262 = scmp.eq.s32.totalorder %s21, 0
      %p263 = por %p261, %p262
      %p264 = scmp.ne.s32.totalorder %s256, %s258
      %p265 = scmp.eq.s32.totalorder %s26, 2
      %p266 = por %p264, %p265
      %p267 = scmp.ne.s32.totalorder %s258, %s259
      %p268 = scmp.eq.s32.totalorder %s26, 0
      %p269 = por %p267, %p268
      %p270 = scmp.ne.s32.totalorder %s258, %s259
      %p271 = scmp.eq.s32.totalorder %s27, 2
      %p272 = por %p270, %p271
      %p274 = scmp.ne.s32.totalorder %s259, %s273
      %p275 = scmp.eq.s32.totalorder %s27, 0
      %p276 = por %p274, %p275
      %s277 = ssub.s32 %s29, %s36
      %p278 = scmp.eq.s32.totalorder %s277, 0
      %s280 = sadd.s32 %s279, 1
      %s281 = scalar_select %p278, %s279, %s280
      %p284 = pneg %p278
      %p285 = scmp.eq.s32.totalorder %s21, 2
      %p286 = por %p284, %p285
      %p287 = scmp.ne.s32.totalorder %s279, %s282
      %p288 = scmp.eq.s32.totalorder %s21, 0
      %p289 = por %p287, %p288
      %p290 = scmp.ne.s32.totalorder %s279, %s282
      %p291 = scmp.eq.s32.totalorder %s26, 2
      %p292 = por %p290, %p291
      %p293 = scmp.ne.s32.totalorder %s282, %s283
      %p294 = scmp.eq.s32.totalorder %s26, 0
      %p295 = por %p293, %p294
      %p296 = scmp.ne.s32.totalorder %s282, %s283
      %p297 = scmp.eq.s32.totalorder %s27, 2
      %p298 = por %p296, %p297
      %p300 = scmp.ne.s32.totalorder %s283, %s299
      %p301 = scmp.eq.s32.totalorder %s27, 0
      %p302 = por %p300, %p301
      %p303 = scmp.le.s32.totalorder 1, %s21
      %p304 = scmp.lt.s32.totalorder %s21, 4
      %p305 = pnand %p303, %p304
      %p306 = pneg %p305
      // Predicated region
      $region9: #{tpu_custom_call.1} parent=5 // pred_check
        _
      $region10: #{tpu_custom_call.1} parent=5 // pred_check_branch
        %308 = sbr.rel (%p305) target = $region12
      $region11: #{tpu_custom_call.1} parent=5 // pred_region
        %s309 = ssub.s32 %s21, 1
        // Predicated region
        $region13: #{tpu_custom_call.1} parent=11 // pred_check
          %p310 = pneg %p59
        $region14: #{tpu_custom_call.1} parent=11 // pred_check_branch
          %312 = sbr.rel (%p310) target = $region16
        $region15: #{tpu_custom_call.1} parent=11 // pred_region
          %314 = vsyncadd [#allocation7], 0
          %s315 = smul.addr %s31, 4
          %s316 = scalar_lea.hbm %s0, %s315
          %s318 = sshll.u32 %s316, 4
          %s319 = int_to_ptr.hbm [resolvable:$true] %s318
          %s320 = sshll.u32 [#allocation6], 4
          %s321 = int_to_ptr.vmem [resolvable:$true] %s320
          %323 = dma.hbm_to_vmem [thread:$0]  %s319, 64, %s321, [#allocation7]
        $region16: #{tpu_custom_call.1} parent=11 // pred_fallthru
          _
        // Predicated region
        $region17: #{tpu_custom_call.1} parent=11 // pred_check
          %p324 = pneg %p80
        $region18: #{tpu_custom_call.1} parent=11 // pred_check_branch
          %326 = sbr.rel (%p324) target = $region20
        $region19: #{tpu_custom_call.1} parent=11 // pred_region
          %328 = vsyncadd [#allocation10], 0
          %s329 = sshll.u32 %s1, 4
          %s330 = int_to_ptr.hbm [resolvable:$true] %s329
          %s331 = sshll.u32 [#allocation9], 4
          %s332 = int_to_ptr.vmem [resolvable:$true] %s331
          %337 = dma.hbm_to_vmem [thread:$0]  %s330, 1024, %s332, [#allocation10], 64, 64, 4
        $region20: #{tpu_custom_call.1} parent=11 // pred_fallthru
          _
        // Predicated region
        $region21: #{tpu_custom_call.1} parent=11 // pred_check
          %p338 = pneg %p101
        $region22: #{tpu_custom_call.1} parent=11 // pred_check_branch
          %340 = sbr.rel (%p338) target = $region24
        $region23: #{tpu_custom_call.1} parent=11 // pred_region
          _
        $region24: #{tpu_custom_call.1} parent=11 // pred_fallthru
          _
        // Predicated region
        $region25: #{tpu_custom_call.1} parent=11 // pred_check
          %p341 = pneg %p122
        $region26: #{tpu_custom_call.1} parent=11 // pred_check_branch
          %343 = sbr.rel (%p341) target = $region28
        $region27: #{tpu_custom_call.1} parent=11 // pred_region
          _
        $region28: #{tpu_custom_call.1} parent=11 // pred_fallthru
          _
        // Predicated region
        $region29: #{tpu_custom_call.1} parent=11 // pred_check
          %p344 = pneg %p143
        $region30: #{tpu_custom_call.1} parent=11 // pred_check_branch
          %346 = sbr.rel (%p344) target = $region32
        $region31: #{tpu_custom_call.1} parent=11 // pred_region
          _
        $region32: #{tpu_custom_call.1} parent=11 // pred_fallthru
          _
        // Predicated region
        $region33: #{tpu_custom_call.1} parent=11 // pred_check
          %p347 = pneg %p164
        $region34: #{tpu_custom_call.1} parent=11 // pred_check_branch
          %349 = sbr.rel (%p347) target = $region36
        $region35: #{tpu_custom_call.1} parent=11 // pred_region
          %351 = vsyncadd [#allocation10], 0
          %s352 = sshll.u32 %s5, 4
          %s353 = int_to_ptr.hbm [resolvable:$true] %s352
          %s354 = sshll.u32 [#allocation11], 4
          %s355 = int_to_ptr.vmem [resolvable:$true] %s354
          %360 = dma.hbm_to_vmem [thread:$0]  %s353, 1024, %s355, [#allocation10], 64, 64, 4
        $region36: #{tpu_custom_call.1} parent=11 // pred_fallthru
          _
        // Predicated region
        $region37: #{tpu_custom_call.1} parent=11 // pred_check
          %p361 = pneg %p185
        $region38: #{tpu_custom_call.1} parent=11 // pred_check_branch
          %363 = sbr.rel (%p361) target = $region40
        $region39: #{tpu_custom_call.1} parent=11 // pred_region
          _
        $region40: #{tpu_custom_call.1} parent=11 // pred_fallthru
          _
        // Predicated region
        $region41: #{tpu_custom_call.1} parent=11 // pred_check
          %p364 = pneg %p206
        $region42: #{tpu_custom_call.1} parent=11 // pred_check_branch
          %366 = sbr.rel (%p364) target = $region44
        $region43: #{tpu_custom_call.1} parent=11 // pred_region
          _
        $region44: #{tpu_custom_call.1} parent=11 // pred_fallthru
          _
        // Predicated region
        $region45: #{tpu_custom_call.1} parent=11 // pred_check
          %p367 = pneg %p227
        $region46: #{tpu_custom_call.1} parent=11 // pred_check_branch
          %369 = sbr.rel (%p367) target = $region48
        $region47: #{tpu_custom_call.1} parent=11 // pred_region
          _
        $region48: #{tpu_custom_call.1} parent=11 // pred_fallthru
          _
        // Predicated region
        $region49: #{tpu_custom_call.1} parent=11 // pred_check
          %p370 = pneg %p248
        $region50: #{tpu_custom_call.1} parent=11 // pred_check_branch
          %372 = sbr.rel (%p370) target = $region52
        $region51: #{tpu_custom_call.1} parent=11 // pred_region
          %374 = vsyncadd [#allocation13], 0
          %s375 = sshll.u32 %s9, 4
          %s376 = int_to_ptr.hbm [resolvable:$true] %s375
          %s377 = sshll.u32 [#allocation12], 4
          %s378 = int_to_ptr.vmem [resolvable:$true] %s377
          %383 = dma.hbm_to_vmem [thread:$0]  %s376, 1024, %s378, [#allocation13], 64, 64, 4
        $region52: #{tpu_custom_call.1} parent=11 // pred_fallthru
          _
        // Predicated region
        $region53: #{tpu_custom_call.1} parent=11 // pred_check
          %p384 = pneg %p269
        $region54: #{tpu_custom_call.1} parent=11 // pred_check_branch
          %386 = sbr.rel (%p384) target = $region56
        $region55: #{tpu_custom_call.1} parent=11 // pred_region
          _
        $region56: #{tpu_custom_call.1} parent=11 // pred_fallthru
          _
      $region12: #{tpu_custom_call.1} parent=5 // pred_fallthru
        _
      %p387 = scmp.lt.s32.totalorder %s21, 3
      // Predicated region
      $region57: #{tpu_custom_call.1} parent=5 // pred_check
        %p388 = pneg %p387
      $region58: #{tpu_custom_call.1} parent=5 // pred_check_branch
        %390 = sbr.rel (%p388) target = $region60
      $region59: #{tpu_custom_call.1} parent=5 // pred_region
        _
      $region60: #{tpu_custom_call.1} parent=5 // pred_fallthru
        _
      %p391 = scmp.le.s32.totalorder 1, %s21
      %p392 = scmp.lt.s32.totalorder %s21, 4
      %p393 = pnand %p391, %p392
      %p394 = pneg %p393
      // Predicated region
      $region61: #{tpu_custom_call.1} parent=5 // pred_check
        _
      $region62: #{tpu_custom_call.1} parent=5 // pred_check_branch
        %396 = sbr.rel (%p393) target = $region64
      $region63: #{tpu_custom_call.1} parent=5 // pred_region
        %s397 = ssub.s32 %s21, 1
        // Predicated region
        $region65: #{tpu_custom_call.1} parent=63 // pred_check
          %p398 = pneg %p59
        $region66: #{tpu_custom_call.1} parent=63 // pred_check_branch
          %400 = sbr.rel (%p398) target = $region68
        $region67: #{tpu_custom_call.1} parent=63 // pred_region
          %402 = dma.done [#allocation7], 64
        $region68: #{tpu_custom_call.1} parent=63 // pred_fallthru
          _
        // Predicated region
        $region69: #{tpu_custom_call.1} parent=63 // pred_check
          %p403 = pneg %p80
        $region70: #{tpu_custom_call.1} parent=63 // pred_check_branch
          %405 = sbr.rel (%p403) target = $region72
        $region71: #{tpu_custom_call.1} parent=63 // pred_region
          %407 = dma.done [#allocation10], 1024
        $region72: #{tpu_custom_call.1} parent=63 // pred_fallthru
          _
        // Predicated region
        $region73: #{tpu_custom_call.1} parent=63 // pred_check
          %p408 = pneg %p164
        $region74: #{tpu_custom_call.1} parent=63 // pred_check_branch
          %410 = sbr.rel (%p408) target = $region76
        $region75: #{tpu_custom_call.1} parent=63 // pred_region
          %412 = dma.done [#allocation10], 1024
        $region76: #{tpu_custom_call.1} parent=63 // pred_fallthru
          _
        // Predicated region
        $region77: #{tpu_custom_call.1} parent=63 // pred_check
          %p413 = pneg %p248
        $region78: #{tpu_custom_call.1} parent=63 // pred_check_branch
          %415 = sbr.rel (%p413) target = $region80
        $region79: #{tpu_custom_call.1} parent=63 // pred_region
          %417 = dma.done [#allocation13], 1024
        $region80: #{tpu_custom_call.1} parent=63 // pred_fallthru
          _
        %p418 = pneg %p59
        %p419 = pneg %p56
        %p420 = pneg %p80
        %p421 = pneg %p77
        %p422 = pneg %p101
        %p423 = pneg %p98
        %p424 = pneg %p122
        %p425 = pneg %p119
        %p426 = pneg %p143
        %p427 = pneg %p140
        %p428 = pneg %p164
        %p429 = pneg %p161
        %p430 = pneg %p185
        %p431 = pneg %p182
        %p432 = pneg %p206
        %p433 = pneg %p203
        %p434 = pneg %p227
        %p435 = pneg %p224
        %p436 = pneg %p248
        %p437 = pneg %p245
        %p438 = pneg %p269
        %p439 = pneg %p266
        %p440 = pneg %p295
        %p441 = pneg %p292
        %p442 = scmp.eq.s32.totalorder %s30, 0
        %p443 = scmp.eq.s32.totalorder %s31, 0
        %p444 = pnand %p442, %p443
        %p445 = pneg %p444
        // Predicated region
        $region81: #{tpu_custom_call.1} parent=63 // pred_check
          _
        $region82: #{tpu_custom_call.1} parent=63 // pred_check_branch
          %447 = sbr.rel (%p444) target = $region84
        $region83: #{tpu_custom_call.1} parent=63 // pred_region
          %448 = vst [vmem:[#allocation2] sm:$0x1] 0.0
          %449 = vst [vmem:[#allocation3] sm:$0x1] 0.0
          %450 = vst [vmem:[#allocation4] sm:$0x1] 0.0
          %451 = vst [vmem:[#allocation5] sm:$0x1] 0.0
        $region84: #{tpu_custom_call.1} parent=63 // pred_fallthru
          _
        // Predicated region
        $region85: #{tpu_custom_call.1} parent=63 // pred_check
          %p452 = pneg %p442
        $region86: #{tpu_custom_call.1} parent=63 // pred_check_branch
          %454 = sbr.rel (%p452) target = $region88
        $region87: #{tpu_custom_call.1} parent=63 // pred_region
          %v455 = vld [vmem:[#allocation6] sm:$0xf]
          %v456 = vld [vmem:[#allocation9] sm:$0xf]
          %v457 = vld [vmem:[#allocation9 + $0x4] sm:$0xf]
          %v458 = vld [vmem:[#allocation9 + $0x8] sm:$0xf]
          %v459 = vld [vmem:[#allocation9 + $0xc] sm:$0xf]
          %v460 = vld [vmem:[#allocation9 + $0x10] sm:$0xf]
          %v461 = vld [vmem:[#allocation9 + $0x14] sm:$0xf]
          %v462 = vld [vmem:[#allocation9 + $0x18] sm:$0xf]
          %v463 = vld [vmem:[#allocation9 + $0x1c] sm:$0xf]
          %v464 = vld [vmem:[#allocation9 + $0x20] sm:$0xf]
          %v465 = vld [vmem:[#allocation9 + $0x24] sm:$0xf]
          %v466 = vld [vmem:[#allocation9 + $0x28] sm:$0xf]
          %v467 = vld [vmem:[#allocation9 + $0x2c] sm:$0xf]
          %v468 = vld [vmem:[#allocation9 + $0x30] sm:$0xf]
          %v469 = vld [vmem:[#allocation9 + $0x34] sm:$0xf]
          %v470 = vld [vmem:[#allocation9 + $0x38] sm:$0xf]
          %v471 = vld [vmem:[#allocation9 + $0x3c] sm:$0xf]
          %v472 = vld [vmem:[%s2] sm:$0x1]
          %v474 = vperm.slane %v472, 0
          %v492 = vunpack.c.l.b16 %v456
          %v493 = vunpack.c.l.b16 %v457
          %v494 = vunpack.c.l.b16 %v458
          %v495 = vunpack.c.l.b16 %v459
          %v496 = vunpack.c.l.b16 %v460
          %v497 = vunpack.c.l.b16 %v461
          %v498 = vunpack.c.l.b16 %v462
          %v499 = vunpack.c.l.b16 %v463
          %v500 = vunpack.c.l.b16 %v464
          %v501 = vunpack.c.l.b16 %v465
          %v502 = vunpack.c.l.b16 %v466
          %v503 = vunpack.c.l.b16 %v467
          %v504 = vunpack.c.l.b16 %v468
          %v505 = vunpack.c.l.b16 %v469
          %v506 = vunpack.c.l.b16 %v470
          %v507 = vunpack.c.l.b16 %v471
          %v508 = vpack.c.b16 %v493, %v492
          %v509 = vpack.c.b16 %v495, %v494
          %v510 = vpack.c.b16 %v497, %v496
          %v511 = vpack.c.b16 %v499, %v498
          %v512 = vpack.c.b16 %v501, %v500
          %v513 = vpack.c.b16 %v503, %v502
          %v514 = vpack.c.b16 %v505, %v504
          %v515 = vpack.c.b16 %v507, %v506
          %524 = vmatpush.bf16.msra.mxu0 %v515
          %525 = vmatpush.bf16.msra.mxu0 %v514
          %526 = vmatpush.bf16.msra.mxu0 %v513
          %527 = vmatpush.bf16.msra.mxu0 %v512
          %528 = vmatpush.bf16.msra.mxu0 %v511
          %529 = vmatpush.bf16.msra.mxu0 %v510
          %530 = vmatpush.bf16.msra.mxu0 %v509
          %531 = vmatpush.bf16.msra.mxu0 %v508
          %532 = vmatmul.bf16.gmra.mxu0 %v455
          %v533 = vpop.f32.mrf.mxu0
          %v534 = vadd.f32 %v474, %v533
          %v535 = vpop.f32.mrf.mxu0
          %536 = vdwg.mxu0
          %v537 = vlaneseq
          %v538 = vshrl.u32 %v537, 7
          %s539 = smul.u32 %s31, 8
          %v540 = vstv %s539
          %v541 = vadd.s32 %v538, %v540
          %vm542 = vcmp.lt.s32.totalorder %v541, 8
          %v543 = vsel %vm542, 1, 0
          %v544 = vcvt.s32.f32 %v543
          %v545 = vmul.f32 %v534, %v544
          %v546 = vld [vmem:[#allocation2] sm:$0x1]
          %v547 = vrot.slane %v545, 4
          %v548 = vadd.f32 %v545, %v547
          %v549 = vrot.slane %v548, 2
          %v550 = vadd.f32 %v548, %v549
          %v551 = vrot.slane %v550, 1
          %v552 = vadd.f32 %v550, %v551
          %v553 = vadd.f32 %v546, %v552
          %554 = vst [vmem:[#allocation2] sm:$0x1] %v553
          %v555 = vld [vmem:[#allocation3] sm:$0x1]
          %v556 = vmul.f32 %v534, %v545
          %v557 = vrot.slane %v556, 4
          %v558 = vadd.f32 %v556, %v557
          %v559 = vrot.slane %v558, 2
          %v560 = vadd.f32 %v558, %v559
          %v561 = vrot.slane %v560, 1
          %v562 = vadd.f32 %v560, %v561
          %v563 = vadd.f32 %v555, %v562
          %564 = vst [vmem:[#allocation3] sm:$0x1] %v563
          %565 = vst [vmem:[#allocation14] sm:$0xff] 0.0
        $region88: #{tpu_custom_call.1} parent=63 // pred_fallthru
          _
        %p566 = scmp.eq.s32.totalorder %s30, 1
        // Predicated region
        $region89: #{tpu_custom_call.1} parent=63 // pred_check
          %p567 = pneg %p566
        $region90: #{tpu_custom_call.1} parent=63 // pred_check_branch
          %569 = sbr.rel (%p567) target = $region92
        $region91: #{tpu_custom_call.1} parent=63 // pred_region
          %v570 = vld [vmem:[#allocation6] sm:$0xf]
          %v571 = vld [vmem:[#allocation9] sm:$0xf]
          %v572 = vld [vmem:[#allocation9 + $0x4] sm:$0xf]
          %v573 = vld [vmem:[#allocation9 + $0x8] sm:$0xf]
          %v574 = vld [vmem:[#allocation9 + $0xc] sm:$0xf]
          %v575 = vld [vmem:[#allocation9 + $0x10] sm:$0xf]
          %v576 = vld [vmem:[#allocation9 + $0x14] sm:$0xf]
          %v577 = vld [vmem:[#allocation9 + $0x18] sm:$0xf]
          %v578 = vld [vmem:[#allocation9 + $0x1c] sm:$0xf]
          %v579 = vld [vmem:[#allocation9 + $0x20] sm:$0xf]
          %v580 = vld [vmem:[#allocation9 + $0x24] sm:$0xf]
          %v581 = vld [vmem:[#allocation9 + $0x28] sm:$0xf]
          %v582 = vld [vmem:[#allocation9 + $0x2c] sm:$0xf]
          %v583 = vld [vmem:[#allocation9 + $0x30] sm:$0xf]
          %v584 = vld [vmem:[#allocation9 + $0x34] sm:$0xf]
          %v585 = vld [vmem:[#allocation9 + $0x38] sm:$0xf]
          %v586 = vld [vmem:[#allocation9 + $0x3c] sm:$0xf]
          %v587 = vld [vmem:[%s2] sm:$0x1]
          %v589 = vperm.slane %v587, 0
          %v607 = vunpack.c.l.b16 %v571
          %v608 = vunpack.c.l.b16 %v572
          %v609 = vunpack.c.l.b16 %v573
          %v610 = vunpack.c.l.b16 %v574
          %v611 = vunpack.c.l.b16 %v575
          %v612 = vunpack.c.l.b16 %v576
          %v613 = vunpack.c.l.b16 %v577
          %v614 = vunpack.c.l.b16 %v578
          %v615 = vunpack.c.l.b16 %v579
          %v616 = vunpack.c.l.b16 %v580
          %v617 = vunpack.c.l.b16 %v581
          %v618 = vunpack.c.l.b16 %v582
          %v619 = vunpack.c.l.b16 %v583
          %v620 = vunpack.c.l.b16 %v584
          %v621 = vunpack.c.l.b16 %v585
          %v622 = vunpack.c.l.b16 %v586
          %v623 = vpack.c.b16 %v608, %v607
          %v624 = vpack.c.b16 %v610, %v609
          %v625 = vpack.c.b16 %v612, %v611
          %v626 = vpack.c.b16 %v614, %v613
          %v627 = vpack.c.b16 %v616, %v615
          %v628 = vpack.c.b16 %v618, %v617
          %v629 = vpack.c.b16 %v620, %v619
          %v630 = vpack.c.b16 %v622, %v621
          %639 = vmatpush.bf16.msra.mxu0 %v630
          %640 = vmatpush.bf16.msra.mxu0 %v629
          %641 = vmatpush.bf16.msra.mxu0 %v628
          %642 = vmatpush.bf16.msra.mxu0 %v627
          %643 = vmatpush.bf16.msra.mxu0 %v626
          %644 = vmatpush.bf16.msra.mxu0 %v625
          %645 = vmatpush.bf16.msra.mxu0 %v624
          %646 = vmatpush.bf16.msra.mxu0 %v623
          %647 = vmatmul.bf16.gmra.mxu0 %v570
          %v648 = vpop.f32.mrf.mxu0
          %v649 = vadd.f32 %v589, %v648
          %v650 = vpop.f32.mrf.mxu0
          %651 = vdwg.mxu0
          %v652 = vld [vmem:[#allocation2] sm:$0x1]
          %v653 = vmul.f32 %v652, 0.125
          %v654 = vld [vmem:[#allocation3] sm:$0x1]
          %v655 = vmul.f32 %v654, 0.125
          %v656 = vmul.f32 %v653, %v653
          %v657 = vsub.f32 %v655, %v656
          %v658 = vmax.f32 %v657, 0.0
          %v660 = vperm.slane %v653, 0
          %v662 = vsub.f32 %v649, %v660
          %v663 = vadd.f32 %v658, 1e-05
          %v664 = vrsqrt.pop %v663
          %v665 = vmul.f32 %v664, %v663
          %v666 = vmul.f32 %v665, %v664
          %v667 = vmul.f32 0.5, %v666
          %v668 = vsub.f32 1.5, %v667
          %v669 = vmul.f32 %v664, %v668
          %vm670 = vweird.f32 %v663
          %vm671 = vweird.f32 %v664
          %vm672 = vmor %vm670, %vm671
          %v673 = vsel %vm672, %v664, %v669
          %v675 = vperm.slane %v673, 0
          %v677 = vmul.f32 %v662, %v675
          %v678 = vld [vmem:[%s3] sm:$0x1]
          %v680 = vperm.slane %v678, 0
          %v682 = vmul.f32 %v677, %v680
          %v683 = vld [vmem:[%s4] sm:$0x1]
          %v685 = vperm.slane %v683, 0
          %v687 = vadd.f32 %v682, %v685
          %v688 = vmax.f32 %v687, 0.0
          %v689 = vpack.c.bf16 %v688, %v688
          %v690 = vld [vmem:[#allocation11] sm:$0xf]
          %v691 = vld [vmem:[#allocation11 + $0x4] sm:$0xf]
          %v692 = vld [vmem:[#allocation11 + $0x8] sm:$0xf]
          %v693 = vld [vmem:[#allocation11 + $0xc] sm:$0xf]
          %v694 = vld [vmem:[#allocation11 + $0x10] sm:$0xf]
          %v695 = vld [vmem:[#allocation11 + $0x14] sm:$0xf]
          %v696 = vld [vmem:[#allocation11 + $0x18] sm:$0xf]
          %v697 = vld [vmem:[#allocation11 + $0x1c] sm:$0xf]
          %v698 = vld [vmem:[#allocation11 + $0x20] sm:$0xf]
          %v699 = vld [vmem:[#allocation11 + $0x24] sm:$0xf]
          %v700 = vld [vmem:[#allocation11 + $0x28] sm:$0xf]
          %v701 = vld [vmem:[#allocation11 + $0x2c] sm:$0xf]
          %v702 = vld [vmem:[#allocation11 + $0x30] sm:$0xf]
          %v703 = vld [vmem:[#allocation11 + $0x34] sm:$0xf]
          %v704 = vld [vmem:[#allocation11 + $0x38] sm:$0xf]
          %v705 = vld [vmem:[#allocation11 + $0x3c] sm:$0xf]
          %v706 = vld [vmem:[%s6] sm:$0x1]
          %v708 = vperm.slane %v706, 0
          %v726 = vunpack.c.l.b16 %v690
          %v727 = vunpack.c.l.b16 %v691
          %v728 = vunpack.c.l.b16 %v692
          %v729 = vunpack.c.l.b16 %v693
          %v730 = vunpack.c.l.b16 %v694
          %v731 = vunpack.c.l.b16 %v695
          %v732 = vunpack.c.l.b16 %v696
          %v733 = vunpack.c.l.b16 %v697
          %v734 = vunpack.c.l.b16 %v698
          %v735 = vunpack.c.l.b16 %v699
          %v736 = vunpack.c.l.b16 %v700
          %v737 = vunpack.c.l.b16 %v701
          %v738 = vunpack.c.l.b16 %v702
          %v739 = vunpack.c.l.b16 %v703
          %v740 = vunpack.c.l.b16 %v704
          %v741 = vunpack.c.l.b16 %v705
          %v742 = vpack.c.b16 %v727, %v726
          %v743 = vpack.c.b16 %v729, %v728
          %v744 = vpack.c.b16 %v731, %v730
          %v745 = vpack.c.b16 %v733, %v732
          %v746 = vpack.c.b16 %v735, %v734
          %v747 = vpack.c.b16 %v737, %v736
          %v748 = vpack.c.b16 %v739, %v738
          %v749 = vpack.c.b16 %v741, %v740
          %758 = vmatpush.bf16.msra.mxu0 %v749
          %759 = vmatpush.bf16.msra.mxu0 %v748
          %760 = vmatpush.bf16.msra.mxu0 %v747
          %761 = vmatpush.bf16.msra.mxu0 %v746
          %762 = vmatpush.bf16.msra.mxu0 %v745
          %763 = vmatpush.bf16.msra.mxu0 %v744
          %764 = vmatpush.bf16.msra.mxu0 %v743
          %765 = vmatpush.bf16.msra.mxu0 %v742
          %766 = vmatmul.bf16.gmra.mxu0 %v689
          %v767 = vpop.f32.mrf.mxu0
          %v768 = vadd.f32 %v708, %v767
          %v769 = vpop.f32.mrf.mxu0
          %770 = vdwg.mxu0
          %v771 = vlaneseq
          %v772 = vshrl.u32 %v771, 7
          %s773 = smul.u32 %s31, 8
          %v774 = vstv %s773
          %v775 = vadd.s32 %v772, %v774
          %vm776 = vcmp.lt.s32.totalorder %v775, 8
          %v777 = vsel %vm776, 1, 0
          %v778 = vcvt.s32.f32 %v777
          %v779 = vmul.f32 %v768, %v778
          %v780 = vld [vmem:[#allocation4] sm:$0x1]
          %v781 = vrot.slane %v779, 4
          %v782 = vadd.f32 %v779, %v781
          %v783 = vrot.slane %v782, 2
          %v784 = vadd.f32 %v782, %v783
          %v785 = vrot.slane %v784, 1
          %v786 = vadd.f32 %v784, %v785
          %v787 = vadd.f32 %v780, %v786
          %788 = vst [vmem:[#allocation4] sm:$0x1] %v787
          %v789 = vld [vmem:[#allocation5] sm:$0x1]
          %v790 = vmul.f32 %v768, %v779
          %v791 = vrot.slane %v790, 4
          %v792 = vadd.f32 %v790, %v791
          %v793 = vrot.slane %v792, 2
          %v794 = vadd.f32 %v792, %v793
          %v795 = vrot.slane %v794, 1
          %v796 = vadd.f32 %v794, %v795
          %v797 = vadd.f32 %v789, %v796
          %798 = vst [vmem:[#allocation5] sm:$0x1] %v797
          %799 = vst [vmem:[#allocation14] sm:$0xff] 0.0
        $region92: #{tpu_custom_call.1} parent=63 // pred_fallthru
          _
        %p800 = scmp.eq.s32.totalorder %s30, 2
        // Predicated region
        $region93: #{tpu_custom_call.1} parent=63 // pred_check
          %p801 = pneg %p800
        $region94: #{tpu_custom_call.1} parent=63 // pred_check_branch
          %803 = sbr.rel (%p801) target = $region96
        $region95: #{tpu_custom_call.1} parent=63 // pred_region
          %v804 = vld [vmem:[#allocation6] sm:$0xf]
          %v805 = vld [vmem:[#allocation9] sm:$0xf]
          %v806 = vld [vmem:[#allocation9 + $0x4] sm:$0xf]
          %v807 = vld [vmem:[#allocation9 + $0x8] sm:$0xf]
          %v808 = vld [vmem:[#allocation9 + $0xc] sm:$0xf]
          %v809 = vld [vmem:[#allocation9 + $0x10] sm:$0xf]
          %v810 = vld [vmem:[#allocation9 + $0x14] sm:$0xf]
          %v811 = vld [vmem:[#allocation9 + $0x18] sm:$0xf]
          %v812 = vld [vmem:[#allocation9 + $0x1c] sm:$0xf]
          %v813 = vld [vmem:[#allocation9 + $0x20] sm:$0xf]
          %v814 = vld [vmem:[#allocation9 + $0x24] sm:$0xf]
          %v815 = vld [vmem:[#allocation9 + $0x28] sm:$0xf]
          %v816 = vld [vmem:[#allocation9 + $0x2c] sm:$0xf]
          %v817 = vld [vmem:[#allocation9 + $0x30] sm:$0xf]
          %v818 = vld [vmem:[#allocation9 + $0x34] sm:$0xf]
          %v819 = vld [vmem:[#allocation9 + $0x38] sm:$0xf]
          %v820 = vld [vmem:[#allocation9 + $0x3c] sm:$0xf]
          %v821 = vld [vmem:[%s2] sm:$0x1]
          %v823 = vperm.slane %v821, 0
          %v841 = vunpack.c.l.b16 %v805
          %v842 = vunpack.c.l.b16 %v806
          %v843 = vunpack.c.l.b16 %v807
          %v844 = vunpack.c.l.b16 %v808
          %v845 = vunpack.c.l.b16 %v809
          %v846 = vunpack.c.l.b16 %v810
          %v847 = vunpack.c.l.b16 %v811
          %v848 = vunpack.c.l.b16 %v812
          %v849 = vunpack.c.l.b16 %v813
          %v850 = vunpack.c.l.b16 %v814
          %v851 = vunpack.c.l.b16 %v815
          %v852 = vunpack.c.l.b16 %v816
          %v853 = vunpack.c.l.b16 %v817
          %v854 = vunpack.c.l.b16 %v818
          %v855 = vunpack.c.l.b16 %v819
          %v856 = vunpack.c.l.b16 %v820
          %v857 = vpack.c.b16 %v842, %v841
          %v858 = vpack.c.b16 %v844, %v843
          %v859 = vpack.c.b16 %v846, %v845
          %v860 = vpack.c.b16 %v848, %v847
          %v861 = vpack.c.b16 %v850, %v849
          %v862 = vpack.c.b16 %v852, %v851
          %v863 = vpack.c.b16 %v854, %v853
          %v864 = vpack.c.b16 %v856, %v855
          %873 = vmatpush.bf16.msra.mxu0 %v864
          %874 = vmatpush.bf16.msra.mxu0 %v863
          %875 = vmatpush.bf16.msra.mxu0 %v862
          %876 = vmatpush.bf16.msra.mxu0 %v861
          %877 = vmatpush.bf16.msra.mxu0 %v860
          %878 = vmatpush.bf16.msra.mxu0 %v859
          %879 = vmatpush.bf16.msra.mxu0 %v858
          %880 = vmatpush.bf16.msra.mxu0 %v857
          %881 = vmatmul.bf16.gmra.mxu0 %v804
          %v882 = vpop.f32.mrf.mxu0
          %v883 = vadd.f32 %v823, %v882
          %v884 = vpop.f32.mrf.mxu0
          %885 = vdwg.mxu0
          %v886 = vld [vmem:[#allocation2] sm:$0x1]
          %v887 = vmul.f32 %v886, 0.125
          %v888 = vld [vmem:[#allocation3] sm:$0x1]
          %v889 = vmul.f32 %v888, 0.125
          %v890 = vmul.f32 %v887, %v887
          %v891 = vsub.f32 %v889, %v890
          %v892 = vmax.f32 %v891, 0.0
          %v894 = vperm.slane %v887, 0
          %v896 = vsub.f32 %v883, %v894
          %v897 = vadd.f32 %v892, 1e-05
          %v898 = vrsqrt.pop %v897
          %v899 = vmul.f32 %v898, %v897
          %v900 = vmul.f32 %v899, %v898
          %v901 = vmul.f32 0.5, %v900
          %v902 = vsub.f32 1.5, %v901
          %v903 = vmul.f32 %v898, %v902
          %vm904 = vweird.f32 %v897
          %vm905 = vweird.f32 %v898
          %vm906 = vmor %vm904, %vm905
          %v907 = vsel %vm906, %v898, %v903
          %v909 = vperm.slane %v907, 0
          %v911 = vmul.f32 %v896, %v909
          %v912 = vld [vmem:[%s3] sm:$0x1]
          %v914 = vperm.slane %v912, 0
          %v916 = vmul.f32 %v911, %v914
          %v917 = vld [vmem:[%s4] sm:$0x1]
          %v919 = vperm.slane %v917, 0
          %v921 = vadd.f32 %v916, %v919
          %v922 = vmax.f32 %v921, 0.0
          %v923 = vpack.c.bf16 %v922, %v922
          %v924 = vld [vmem:[#allocation11] sm:$0xf]
          %v925 = vld [vmem:[#allocation11 + $0x4] sm:$0xf]
          %v926 = vld [vmem:[#allocation11 + $0x8] sm:$0xf]
          %v927 = vld [vmem:[#allocation11 + $0xc] sm:$0xf]
          %v928 = vld [vmem:[#allocation11 + $0x10] sm:$0xf]
          %v929 = vld [vmem:[#allocation11 + $0x14] sm:$0xf]
          %v930 = vld [vmem:[#allocation11 + $0x18] sm:$0xf]
          %v931 = vld [vmem:[#allocation11 + $0x1c] sm:$0xf]
          %v932 = vld [vmem:[#allocation11 + $0x20] sm:$0xf]
          %v933 = vld [vmem:[#allocation11 + $0x24] sm:$0xf]
          %v934 = vld [vmem:[#allocation11 + $0x28] sm:$0xf]
          %v935 = vld [vmem:[#allocation11 + $0x2c] sm:$0xf]
          %v936 = vld [vmem:[#allocation11 + $0x30] sm:$0xf]
          %v937 = vld [vmem:[#allocation11 + $0x34] sm:$0xf]
          %v938 = vld [vmem:[#allocation11 + $0x38] sm:$0xf]
          %v939 = vld [vmem:[#allocation11 + $0x3c] sm:$0xf]
          %v940 = vld [vmem:[%s6] sm:$0x1]
          %v942 = vperm.slane %v940, 0
          %v960 = vunpack.c.l.b16 %v924
          %v961 = vunpack.c.l.b16 %v925
          %v962 = vunpack.c.l.b16 %v926
          %v963 = vunpack.c.l.b16 %v927
          %v964 = vunpack.c.l.b16 %v928
          %v965 = vunpack.c.l.b16 %v929
          %v966 = vunpack.c.l.b16 %v930
          %v967 = vunpack.c.l.b16 %v931
          %v968 = vunpack.c.l.b16 %v932
          %v969 = vunpack.c.l.b16 %v933
          %v970 = vunpack.c.l.b16 %v934
          %v971 = vunpack.c.l.b16 %v935
          %v972 = vunpack.c.l.b16 %v936
          %v973 = vunpack.c.l.b16 %v937
          %v974 = vunpack.c.l.b16 %v938
          %v975 = vunpack.c.l.b16 %v939
          %v976 = vpack.c.b16 %v961, %v960
          %v977 = vpack.c.b16 %v963, %v962
          %v978 = vpack.c.b16 %v965, %v964
          %v979 = vpack.c.b16 %v967, %v966
          %v980 = vpack.c.b16 %v969, %v968
          %v981 = vpack.c.b16 %v971, %v970
          %v982 = vpack.c.b16 %v973, %v972
          %v983 = vpack.c.b16 %v975, %v974
          %992 = vmatpush.bf16.msra.mxu0 %v983
          %993 = vmatpush.bf16.msra.mxu0 %v982
          %994 = vmatpush.bf16.msra.mxu0 %v981
          %995 = vmatpush.bf16.msra.mxu0 %v980
          %996 = vmatpush.bf16.msra.mxu0 %v979
          %997 = vmatpush.bf16.msra.mxu0 %v978
          %998 = vmatpush.bf16.msra.mxu0 %v977
          %999 = vmatpush.bf16.msra.mxu0 %v976
          %1000 = vmatmul.bf16.gmra.mxu0 %v923
          %v1001 = vpop.f32.mrf.mxu0
          %v1002 = vadd.f32 %v942, %v1001
          %v1003 = vpop.f32.mrf.mxu0
          %1004 = vdwg.mxu0
          %v1005 = vld [vmem:[#allocation4] sm:$0x1]
          %v1006 = vmul.f32 %v1005, 0.125
          %v1007 = vld [vmem:[#allocation5] sm:$0x1]
          %v1008 = vmul.f32 %v1007, 0.125
          %v1009 = vmul.f32 %v1006, %v1006
          %v1010 = vsub.f32 %v1008, %v1009
          %v1011 = vmax.f32 %v1010, 0.0
          %v1013 = vperm.slane %v1006, 0
          %v1015 = vsub.f32 %v1002, %v1013
          %v1016 = vadd.f32 %v1011, 1e-05
          %v1017 = vrsqrt.pop %v1016
          %v1018 = vmul.f32 %v1017, %v1016
          %v1019 = vmul.f32 %v1018, %v1017
          %v1020 = vmul.f32 0.5, %v1019
          %v1021 = vsub.f32 1.5, %v1020
          %v1022 = vmul.f32 %v1017, %v1021
          %vm1023 = vweird.f32 %v1016
          %vm1024 = vweird.f32 %v1017
          %vm1025 = vmor %vm1023, %vm1024
          %v1026 = vsel %vm1025, %v1017, %v1022
          %v1028 = vperm.slane %v1026, 0
          %v1030 = vmul.f32 %v1015, %v1028
          %v1031 = vld [vmem:[%s7] sm:$0x1]
          %v1033 = vperm.slane %v1031, 0
          %v1035 = vmul.f32 %v1030, %v1033
          %v1036 = vld [vmem:[%s8] sm:$0x1]
          %v1038 = vperm.slane %v1036, 0
          %v1040 = vadd.f32 %v1035, %v1038
          %v1041 = vmax.f32 %v1040, 0.0
          %v1042 = vpack.c.bf16 %v1041, %v1041
          %v1043 = vld [vmem:[#allocation12] sm:$0xf]
          %v1044 = vld [vmem:[#allocation12 + $0x4] sm:$0xf]
          %v1045 = vld [vmem:[#allocation12 + $0x8] sm:$0xf]
          %v1046 = vld [vmem:[#allocation12 + $0xc] sm:$0xf]
          %v1047 = vld [vmem:[#allocation12 + $0x10] sm:$0xf]
          %v1048 = vld [vmem:[#allocation12 + $0x14] sm:$0xf]
          %v1049 = vld [vmem:[#allocation12 + $0x18] sm:$0xf]
          %v1050 = vld [vmem:[#allocation12 + $0x1c] sm:$0xf]
          %v1051 = vld [vmem:[#allocation12 + $0x20] sm:$0xf]
          %v1052 = vld [vmem:[#allocation12 + $0x24] sm:$0xf]
          %v1053 = vld [vmem:[#allocation12 + $0x28] sm:$0xf]
          %v1054 = vld [vmem:[#allocation12 + $0x2c] sm:$0xf]
          %v1055 = vld [vmem:[#allocation12 + $0x30] sm:$0xf]
          %v1056 = vld [vmem:[#allocation12 + $0x34] sm:$0xf]
          %v1057 = vld [vmem:[#allocation12 + $0x38] sm:$0xf]
          %v1058 = vld [vmem:[#allocation12 + $0x3c] sm:$0xf]
          %v1059 = vld [vmem:[%s10] sm:$0x1]
          %v1061 = vperm.slane %v1059, 0
          %v1079 = vunpack.c.l.b16 %v1043
          %v1080 = vunpack.c.l.b16 %v1044
          %v1081 = vunpack.c.l.b16 %v1045
          %v1082 = vunpack.c.l.b16 %v1046
          %v1083 = vunpack.c.l.b16 %v1047
          %v1084 = vunpack.c.l.b16 %v1048
          %v1085 = vunpack.c.l.b16 %v1049
          %v1086 = vunpack.c.l.b16 %v1050
          %v1087 = vunpack.c.l.b16 %v1051
          %v1088 = vunpack.c.l.b16 %v1052
          %v1089 = vunpack.c.l.b16 %v1053
          %v1090 = vunpack.c.l.b16 %v1054
          %v1091 = vunpack.c.l.b16 %v1055
          %v1092 = vunpack.c.l.b16 %v1056
          %v1093 = vunpack.c.l.b16 %v1057
          %v1094 = vunpack.c.l.b16 %v1058
          %v1095 = vpack.c.b16 %v1080, %v1079
          %v1096 = vpack.c.b16 %v1082, %v1081
          %v1097 = vpack.c.b16 %v1084, %v1083
          %v1098 = vpack.c.b16 %v1086, %v1085
          %v1099 = vpack.c.b16 %v1088, %v1087
          %v1100 = vpack.c.b16 %v1090, %v1089
          %v1101 = vpack.c.b16 %v1092, %v1091
          %v1102 = vpack.c.b16 %v1094, %v1093
          %1111 = vmatpush.bf16.msra.mxu0 %v1102
          %1112 = vmatpush.bf16.msra.mxu0 %v1101
          %1113 = vmatpush.bf16.msra.mxu0 %v1100
          %1114 = vmatpush.bf16.msra.mxu0 %v1099
          %1115 = vmatpush.bf16.msra.mxu0 %v1098
          %1116 = vmatpush.bf16.msra.mxu0 %v1097
          %1117 = vmatpush.bf16.msra.mxu0 %v1096
          %1118 = vmatpush.bf16.msra.mxu0 %v1095
          %1119 = vmatmul.bf16.gmra.mxu0 %v1042
          %v1120 = vpop.f32.mrf.mxu0
          %v1121 = vadd.f32 %v1061, %v1120
          %v1122 = vpop.f32.mrf.mxu0
          %1123 = vdwg.mxu0
          %v1124 = vmul.f32 %v1121, %v1121
          %1125 = vadd.xlane.f32.xlu0 %v1124
          %v1126 = vpop.xlane.xlu0 %1125
          %v1127 = vmax.f32 %v1126, 1e-24
          %v1128 = vrsqrt.pop %v1127
          %v1129 = vmul.f32 %v1128, %v1127
          %v1130 = vmul.f32 %v1129, %v1128
          %v1131 = vmul.f32 0.5, %v1130
          %v1132 = vsub.f32 1.5, %v1131
          %v1133 = vmul.f32 %v1128, %v1132
          %vm1134 = vweird.f32 %v1127
          %vm1135 = vweird.f32 %v1128
          %vm1136 = vmor %vm1134, %vm1135
          %v1137 = vsel %vm1136, %v1128, %v1133
          %v1138 = vmul.f32 %v1121, %v1137
          %1139 = vst [vmem:[#allocation14] sm:$0xff] %v1138
        $region96: #{tpu_custom_call.1} parent=63 // pred_fallthru
          _
        // Predicated region
        $region97: #{tpu_custom_call.1} parent=63 // pred_check
          %p1140 = pneg %p292
        $region98: #{tpu_custom_call.1} parent=63 // pred_check_branch
          %1142 = sbr.rel (%p1140) target = $region100
        $region99: #{tpu_custom_call.1} parent=63 // pred_region
          %1144 = vsyncadd [#allocation8], 0
          %s1145 = smul.addr %s31, 8
          %s1146 = scalar_lea.hbm %s11, %s1145
          %s1148 = sshll.u32 [#allocation14], 4
          %s1149 = int_to_ptr.vmem [resolvable:$true] %s1148
          %s1150 = sshll.u32 %s1146, 4
          %s1151 = int_to_ptr.hbm [resolvable:$true] %s1150
          %1153 = dma.vmem_to_hbm [thread:$0]  %s1149, 128, %s1151, [#allocation8]
        $region100: #{tpu_custom_call.1} parent=63 // pred_fallthru
          _
        // Predicated region
        $region101: #{tpu_custom_call.1} parent=63 // pred_check
          %p1154 = pneg %p292
        $region102: #{tpu_custom_call.1} parent=63 // pred_check_branch
          %1156 = sbr.rel (%p1154) target = $region104
        $region103: #{tpu_custom_call.1} parent=63 // pred_region
          %1158 = dma.done [#allocation8], 128
        $region104: #{tpu_custom_call.1} parent=63 // pred_fallthru
          _
      $region64: #{tpu_custom_call.1} parent=5 // pred_fallthru
        _
      %p1159 = scmp.le.s32.totalorder 2, %s21
      // Predicated region
      $region105: #{tpu_custom_call.1} parent=5 // pred_check
        %p1160 = pneg %p1159
      $region106: #{tpu_custom_call.1} parent=5 // pred_check_branch
        %1162 = sbr.rel (%p1160) target = $region108
      $region107: #{tpu_custom_call.1} parent=5 // pred_region
        %s1163 = ssub.s32 %s21, 2
      $region108: #{tpu_custom_call.1} parent=5 // pred_fallthru
        _
    $region6: #{tpu_custom_call.1} parent=1 // loop_footer
      %s25 = sadd.s32 1, %s21
    $region7: #{tpu_custom_call.1} parent=1 // loop_footer_branch
      %20 = sbr.rel target = $region3
    $region8: #{tpu_custom_call.1} parent=1 // loop_exit
      _
    %1164 = vsyncpa [#allocation7], 1
    %s1165 = scalar_lea.sflag [#allocation7], 1
    %1166 = vsyncpa %s1165, 1
    %1167 = vsyncpa [#allocation10], 1
    %1168 = vsyncpa [#allocation13], 1
    %1169 = vsyncpa [#allocation8], 1
    %s1170 = scalar_lea.sflag [#allocation8], 1
    %1171 = vsyncpa %s1170, 1

</llo_original>
